<compile_context>
chip_gen: v7x
topology: tpu7x:2x2x1
jax: 0.10.0
libtpu: 0.0.40
codegen_flags: <defaults>
</compile_context>

<pallas_src>
import functools
import math

import jax
import jax.numpy as jnp
from jax.experimental import pallas as pl
from jax.experimental.pallas import tpu as pltpu


# ---------------------------------------------------------------------------
# Pallas conv kernel (the hot path)
# ---------------------------------------------------------------------------
def _conv_kernel(x_ref, w_ref, b_ref, o_ref, *, K, TH, Wo):
    """One (image, row-tile, cout-tile) step: K*K shifted matmuls, f32 acc.

    x_ref : [TH+K-1, Wp, Cin]  bf16   (halo'd activation rows)
    w_ref : [K*K, Cin, TC]     bf16   (one (Cin, TC) operand per tap)
    b_ref : [1, TC]            f32
    o_ref : [TH, Wo, TC]       f32
    """
    Cin = x_ref.shape[-1]
    TC = o_ref.shape[-1]
    # Bias folded into the accumulator init; the accumulator lives in vregs
    # (the compiler spills only if register pressure demands it).
    acc = jnp.broadcast_to(b_ref[...], (TH * Wo, TC))
    for kh in range(K):                                   # static unroll (K=3)
        for kw in range(K):
            # Slice the Ref directly: only the needed slab is touched.
            patch = x_ref[kh:kh + TH, kw:kw + Wo, :]      # [TH, Wo, Cin]
            lhs = patch.reshape(TH * Wo, Cin)             # Cin stays minor
            acc = acc + jnp.dot(lhs, w_ref[kh * K + kw],
                                preferred_element_type=jnp.float32)
    # Splitting the non-lane leading dim is layout-free; TC stays on lanes.
    o_ref[...] = acc.reshape(TH, Wo, TC).astype(o_ref.dtype)


def _largest_divisor_leq(n, cap):
    for d in range(min(n, cap), 0, -1):
        if n % d == 0:
            return d
    return 1


def _round_up(n, m):
    return ((n + m - 1) // m) * m


def _vmem_bytes(shape, itemsize):
    """Conservative VMEM footprint of one buffer incl. (sublane, lane) padding."""
    s = list(shape)
    if len(s) >= 1:
        s[-1] = _round_up(s[-1], 128)
    if len(s) >= 2:
        s[-2] = _round_up(s[-2], 16)
    n = 1
    for d in s:
        n *= d
    return n * itemsize


@functools.partial(jax.jit, static_argnames=("stride", "padding", "row_tile"))
def conv2d_pallas(x_nchw, weight_oihw, bias_o=None, *, stride=1, padding=1,
                  row_tile=None):
    """F.conv2d(x, w, bias, stride, padding) with the conv math in Pallas."""
    # TODO(synk): stride > 1 is not implemented in the Pallas hot path.
    assert stride == 1, "Pallas kernel implements the default stride=1 path"
    N, Cin, H, W = x_nchw.shape
    Cout, Cin_w, K, K2 = weight_oihw.shape
    assert Cin == Cin_w and K == K2
    Ho = H + 2 * padding - K + 1
    Wo = W + 2 * padding - K + 1
    Wp = W + 2 * padding

    # Row tile (output rows per grid step) and lane-dense Cout tiling.
    TH = row_tile if row_tile is not None else _largest_divisor_leq(Ho, 32)
    assert Ho % TH == 0, "row_tile must divide the output height"
    nR = Ho // TH
    THp = TH + K - 1                                     # halo'd input rows
    Cout_pad = _round_up(Cout, 128)
    TC = next(t for t in (512, 384, 256, 128) if Cout_pad % t == 0)
    nCT = Cout_pad // TC

    # --- plain-JAX glue (fused by jit): layout, cast, pad, halo gather ------
    x = jnp.transpose(x_nchw, (0, 2, 3, 1)).astype(jnp.bfloat16)      # NHWC
    x = jnp.pad(x, ((0, 0), (padding, padding), (padding, padding), (0, 0)))
    if nR == 1:
        # Single row tile per image: no halo duplication / gather pass needed.
        x_tiles = x[:, None]                              # [N, 1, Hp, Wp, Cin]
    else:
        # Overlapping row tiles (K-1 halo rows) so the grid uses plain Blocked
        # BlockSpecs.  TODO(synk): express the halo via a pl.Element index_map
        # to avoid duplicating (K-1)/TH of the activation in HBM.
        rows = jnp.arange(nR)[:, None] * TH + jnp.arange(THp)[None, :]
        x_tiles = x[:, rows]                              # [N, nR, THp, Wp, Cin]

    # weights [Cout, Cin, K, K] -> [K*K, Cin, Cout_pad] bf16; bias -> [1, Cout_pad]
    w = jnp.transpose(weight_oihw, (2, 3, 1, 0)).reshape(K * K, Cin, Cout)
    w = jnp.pad(w.astype(jnp.bfloat16), ((0, 0), (0, 0), (0, Cout_pad - Cout)))
    b = (jnp.zeros((Cout,), jnp.float32) if bias_o is None
         else bias_o.astype(jnp.float32))
    b = jnp.pad(b, (0, Cout_pad - Cout)).reshape(1, Cout_pad)

    # --- Pallas call --------------------------------------------------------
    kernel = functools.partial(_conv_kernel, K=K, TH=TH, Wo=Wo)
    x_spec = pl.BlockSpec((None, None, THp, Wp, Cin),
                          lambda n, r, c: (n, r, 0, 0, 0))
    w_spec = pl.BlockSpec((K * K, Cin, TC), lambda n, r, c: (0, 0, c))
    b_spec = pl.BlockSpec((1, TC), lambda n, r, c: (0, c))
    o_spec = pl.BlockSpec((None, TH, Wo, TC), lambda n, r, c: (n, r, 0, c))

    # Explicit VMEM budget (double-buffered in/out, tile-padded) with headroom,
    # capped at v7x's 64 MiB physical VMEM.
    per_step = (_vmem_bytes((THp, Wp, Cin), 2) + _vmem_bytes((K * K, Cin, TC), 2)
                + _vmem_bytes((1, TC), 4) + _vmem_bytes((TH, Wo, TC), 4))
    vmem_limit = min(max(4 * per_step, 32 << 20), 64 << 20)

    out = pl.pallas_call(
        kernel,
        out_shape=jax.ShapeDtypeStruct((N, Ho, Wo, Cout_pad), jnp.float32),
        grid_spec=pltpu.PrefetchScalarGridSpec(
            num_scalar_prefetch=0,
            grid=(N, nR, nCT),
            in_specs=[x_spec, w_spec, b_spec],
            out_specs=o_spec),
        compiler_params=pltpu.CompilerParams(
            dimension_semantics=("parallel", "parallel", "parallel"),
            vmem_limit_bytes=vmem_limit),
    )(x_tiles, w, b)

    out = out[..., :Cout]                                 # drop Cout padding
    return jnp.transpose(out, (0, 3, 1, 2)).astype(x_nchw.dtype)


# ---------------------------------------------------------------------------
# Reference conv (for correctness check only)
# ---------------------------------------------------------------------------
def conv2d_ref(x_nchw, weight_oihw, bias_o=None, *, stride=1, padding=1):
    out = jax.lax.conv_general_dilated(
        x_nchw, weight_oihw, window_strides=(stride, stride),
        padding=[(padding, padding), (padding, padding)],
        dimension_numbers=("NCHW", "OIHW", "NCHW"))
    if bias_o is not None:
        out = out + bias_o[None, :, None, None]
    return out


# ---------------------------------------------------------------------------
# SConv2d parameters + forward semantics (mirrors the PyTorch module)
# ---------------------------------------------------------------------------
def init_sconv2d(key, in_channels, out_channels, kernel_size=3, stride=1,
                 padding=1, bias=False, num_specialists=1, hard_sharing=False,
                 use_template_bank=False, template_split_factor=1,
                 num_templates=None):
    assert in_channels % template_split_factor == 0
    num_coefficients = 1 if hard_sharing else num_specialists
    cfg = dict(in_channels=in_channels, out_channels=out_channels,
               kernel_size=kernel_size, stride=stride, padding=padding,
               bias=bias, hard_sharing=hard_sharing,
               use_template_bank=use_template_bank,
               template_split_factor=template_split_factor)
    # kaiming_normal_ std for a [Cout, Cin, K, K] conv weight
    std = math.sqrt(2.0 / (in_channels * kernel_size * kernel_size))
    params = {"cfg": cfg}
    if use_template_bank:
        assert num_templates is not None
        kw_, kb_, kc_ = jax.random.split(key, 3)
        # Conv2dTemplateBank.init: kaiming templates split over Cin, stacked on
        # the last dim -> [Cout, K, K, Cin//tsf, T].
        templates_w = std * jax.random.normal(
            kw_, (out_channels, kernel_size, kernel_size,
                  in_channels // template_split_factor, num_templates),
            jnp.float32)
        # NOTE: PyTorch inits bias templates and coefficients to zeros (to be
        # trained); deterministic random values are used here so the demo
        # exercises the bias / coefficient paths non-trivially.
        templates_b = 0.5 * jax.random.normal(
            kb_, (out_channels, num_templates), jnp.float32)
        coefficients = 0.5 * jax.random.normal(
            kc_, (num_coefficients, num_templates, template_split_factor),
            jnp.float32)
        params.update(templates_weight=templates_w,
                      templates_bias=templates_b,
                      coefficients=coefficients)
    else:
        weights = std * jax.random.normal(
            key, (num_coefficients, out_channels, in_channels,
                  kernel_size, kernel_size), jnp.float32)
        biases = jnp.zeros((num_coefficients, out_channels), jnp.float32)
        params.update(weights=weights, biases=biases)
    return params


def _bank_forward(templates_w, templates_b, coef, use_bias):
    """Conv2dTemplateBank.forward: synthesize (weight, bias) from coefficients.

    Matches torch: matmul over T, .view merging (Cin//tsf, tsf) with the split
    chunk major / split index minor, then permute to [Cout, Cin, K, K].
    """
    Cout, K, _, Cin_split, T = templates_w.shape
    tsf = coef.shape[1]
    w5 = jnp.einsum("oabct,ts->oabcs", templates_w, coef)  # [Cout,K,K,Cin//tsf,tsf]
    w = w5.reshape(Cout, K, K, Cin_split * tsf)            # row-major == .view
    w = jnp.transpose(w, (0, 3, 1, 2))                     # -> [Cout, Cin, K, K]
    b = jnp.matmul(templates_b, coef).sum(axis=1) if use_bias else None
    return w, b


def sconv2d_forward(params, x, specialist, average_specialists=False,
                    conv_fn=conv2d_pallas):
    cfg = params["cfg"]
    stride, padding, use_bias = cfg["stride"], cfg["padding"], cfg["bias"]
    if cfg["use_template_bank"]:
        coefs = params["coefficients"]                     # [num_coef, T, tsf]
        if average_specialists:
            coef = jnp.mean(coefs, axis=0)
        else:
            idx = 0 if cfg["hard_sharing"] else specialist
            coef = coefs[idx]
        w, b = _bank_forward(params["templates_weight"],
                             params["templates_bias"], coef, use_bias)
        return conv_fn(x, w, b, stride=stride, padding=padding)
    weights, biases = params["weights"], params["biases"]
    n = weights.shape[0]
    if average_specialists:
        out = 0.0
        for i in range(n):                                 # average of outputs
            out = out + conv_fn(x, weights[i],
                                biases[i] if use_bias else None,
                                stride=stride, padding=padding)
        return out / n
    idx = 0 if cfg["hard_sharing"] else specialist
    return conv_fn(x, weights[idx], biases[idx] if use_bias else None,
                   stride=stride, padding=padding)


# ---------------------------------------------------------------------------
if __name__ == "__main__":
    root = jax.random.PRNGKey(0)
    kx, k1, k2 = jax.random.split(root, 3)
    N, Cin, H, W, Cout = 2, 4, 16, 16, 8
    x = jax.random.normal(kx, (N, Cin, H, W), jnp.float32)

    # exercise the multi-row-tile (halo) path explicitly
    conv_rows8 = functools.partial(conv2d_pallas, row_tile=8)

    # (a) plain shared convs (use_template_bank=False), 2 specialists, no bias
    p_plain = init_sconv2d(k1, Cin, Cout, num_specialists=2)
    y_plain = sconv2d_forward(p_plain, x, specialist=1, conv_fn=conv_rows8)
    y_plain_avg = sconv2d_forward(p_plain, x, specialist=0,
                                  average_specialists=True, conv_fn=conv_rows8)

    # (b) template-bank convs, split factor 2, with bias, 2 specialists
    #     (default row_tile -> single row tile per image, no halo gather)
    p_bank = init_sconv2d(k2, Cin, Cout, bias=True, num_specialists=2,
                          use_template_bank=True, template_split_factor=2,
                          num_templates=4)
    y_bank = sconv2d_forward(p_bank, x, specialist=0)

    jax.block_until_ready((y_plain, y_plain_avg, y_bank))

    # verify the Pallas conv against XLA's reference conv (bf16-tolerant bound)
    r_plain = sconv2d_forward(p_plain, x, specialist=1, conv_fn=conv2d_ref)
    r_plain_avg = sconv2d_forward(p_plain, x, specialist=0,
                                  average_specialists=True, conv_fn=conv2d_ref)
    r_bank = sconv2d_forward(p_bank, x, specialist=0, conv_fn=conv2d_ref)
    for name, got, ref in (("plain", y_plain, r_plain),
                           ("plain_avg", y_plain_avg, r_plain_avg),
                           ("bank", y_bank, r_bank)):
        assert got.shape == ref.shape == (N, Cout, H, W)
        scale = float(jnp.max(jnp.abs(ref)))
        err = float(jnp.max(jnp.abs(got.astype(jnp.float32)
                                    - ref.astype(jnp.float32))))
        assert err < 0.1 + 0.02 * scale, (
            f"{name}: max abs error {err} (ref scale {scale})")

    print("KERNEL_OK")
</pallas_src>

<mosaic_0001>
module attributes {stable_mosaic.version = 11 : i64} {
  func.func @_conv_kernel(%arg0: i32, %arg1: i32, %arg2: i32, %arg3: memref<1x1x10x18x4xbf16, #tpu.memory_space<vmem>>, %arg4: memref<9x4x128xbf16, #tpu.memory_space<vmem>>, %arg5: memref<1x128xf32, #tpu.memory_space<vmem>>, %arg6: memref<1x8x16x128xf32, #tpu.memory_space<vmem>>) attributes {dimension_semantics = [#tpu.dimension_semantics<parallel>, #tpu.dimension_semantics<parallel>, #tpu.dimension_semantics<parallel>], iteration_bounds = array<i64: 2, 2, 1>, scalar_prefetch = 0 : i64, scratch_operands = 0 : i64, tpu.core_type = #tpu.core_type<tc>, window_params = [{transform_indices = @transform_0, window_bounds = array<i64: 1, 1, 10, 18, 4>}, {transform_indices = @transform_1, window_bounds = array<i64: 9, 4, 128>}, {transform_indices = @transform_2, window_bounds = array<i64: 1, 128>}, {transform_indices = @transform_3, window_bounds = array<i64: 1, 8, 16, 128>}]} {
    %c0 = arith.constant 0 : index
    %c0_0 = arith.constant 0 : index
    %0 = vector.load %arg5[%c0, %c0_0] : memref<1x128xf32, #tpu.memory_space<vmem>>, vector<1x128xf32>
    %1 = vector.shape_cast %0 : vector<1x128xf32> to vector<1x128xf32>
    %2 = vector.broadcast %1 : vector<1x128xf32> to vector<128x128xf32>
    %c0_1 = arith.constant 0 : index
    %c0_2 = arith.constant 0 : index
    %c0_3 = arith.constant 0 : index
    %c0_4 = arith.constant 0 : index
    %c0_5 = arith.constant 0 : index
    %3 = vector.load %arg3[%c0_1, %c0_2, %c0_3, %c0_4, %c0_5] : memref<1x1x10x18x4xbf16, #tpu.memory_space<vmem>>, vector<1x1x8x16x4xbf16>
    %4 = vector.shape_cast %3 : vector<1x1x8x16x4xbf16> to vector<8x16x4xbf16>
    %5 = vector.shape_cast %4 : vector<8x16x4xbf16> to vector<128x4xbf16>
    %c0_6 = arith.constant 0 : index
    %c0_7 = arith.constant 0 : index
    %c0_8 = arith.constant 0 : index
    %6 = vector.load %arg4[%c0_6, %c0_7, %c0_8] : memref<9x4x128xbf16, #tpu.memory_space<vmem>>, vector<1x4x128xbf16>
    %7 = vector.shape_cast %6 : vector<1x4x128xbf16> to vector<4x128xbf16>
    %cst = arith.constant dense<0.000000e+00> : vector<128x128xf32>
    %8 = tpu.matmul %5, %7, %cst {dimension_numbers = #tpu.dot_dimension_numbers<[1], [0], [0], [1], [0, 0, 1, 1], [], []>} : vector<128x4xbf16>, vector<4x128xbf16>, vector<128x128xf32> -> vector<128x128xf32>
    %9 = arith.addf %2, %8 : vector<128x128xf32>
    %c0_9 = arith.constant 0 : index
    %c0_10 = arith.constant 0 : index
    %c0_11 = arith.constant 0 : index
    %c1 = arith.constant 1 : index
    %c0_12 = arith.constant 0 : index
    %10 = vector.load %arg3[%c0_9, %c0_10, %c0_11, %c1, %c0_12] : memref<1x1x10x18x4xbf16, #tpu.memory_space<vmem>>, vector<1x1x8x16x4xbf16>
    %11 = vector.shape_cast %10 : vector<1x1x8x16x4xbf16> to vector<8x16x4xbf16>
    %12 = vector.shape_cast %11 : vector<8x16x4xbf16> to vector<128x4xbf16>
    %c1_13 = arith.constant 1 : index
    %c0_14 = arith.constant 0 : index
    %c0_15 = arith.constant 0 : index
    %13 = vector.load %arg4[%c1_13, %c0_14, %c0_15] : memref<9x4x128xbf16, #tpu.memory_space<vmem>>, vector<1x4x128xbf16>
    %14 = vector.shape_cast %13 : vector<1x4x128xbf16> to vector<4x128xbf16>
    %cst_16 = arith.constant dense<0.000000e+00> : vector<128x128xf32>
    %15 = tpu.matmul %12, %14, %cst_16 {dimension_numbers = #tpu.dot_dimension_numbers<[1], [0], [0], [1], [0, 0, 1, 1], [], []>} : vector<128x4xbf16>, vector<4x128xbf16>, vector<128x128xf32> -> vector<128x128xf32>
    %16 = arith.addf %9, %15 : vector<128x128xf32>
    %c0_17 = arith.constant 0 : index
    %c0_18 = arith.constant 0 : index
    %c0_19 = arith.constant 0 : index
    %c2 = arith.constant 2 : index
    %c0_20 = arith.constant 0 : index
    %17 = vector.load %arg3[%c0_17, %c0_18, %c0_19, %c2, %c0_20] : memref<1x1x10x18x4xbf16, #tpu.memory_space<vmem>>, vector<1x1x8x16x4xbf16>
    %18 = vector.shape_cast %17 : vector<1x1x8x16x4xbf16> to vector<8x16x4xbf16>
    %19 = vector.shape_cast %18 : vector<8x16x4xbf16> to vector<128x4xbf16>
    %c2_21 = arith.constant 2 : index
    %c0_22 = arith.constant 0 : index
    %c0_23 = arith.constant 0 : index
    %20 = vector.load %arg4[%c2_21, %c0_22, %c0_23] : memref<9x4x128xbf16, #tpu.memory_space<vmem>>, vector<1x4x128xbf16>
    %21 = vector.shape_cast %20 : vector<1x4x128xbf16> to vector<4x128xbf16>
    %cst_24 = arith.constant dense<0.000000e+00> : vector<128x128xf32>
    %22 = tpu.matmul %19, %21, %cst_24 {dimension_numbers = #tpu.dot_dimension_numbers<[1], [0], [0], [1], [0, 0, 1, 1], [], []>} : vector<128x4xbf16>, vector<4x128xbf16>, vector<128x128xf32> -> vector<128x128xf32>
    %23 = arith.addf %16, %22 : vector<128x128xf32>
    %c0_25 = arith.constant 0 : index
    %c0_26 = arith.constant 0 : index
    %c1_27 = arith.constant 1 : index
    %c0_28 = arith.constant 0 : index
    %c0_29 = arith.constant 0 : index
    %24 = vector.load %arg3[%c0_25, %c0_26, %c1_27, %c0_28, %c0_29] : memref<1x1x10x18x4xbf16, #tpu.memory_space<vmem>>, vector<1x1x8x16x4xbf16>
    %25 = vector.shape_cast %24 : vector<1x1x8x16x4xbf16> to vector<8x16x4xbf16>
    %26 = vector.shape_cast %25 : vector<8x16x4xbf16> to vector<128x4xbf16>
    %c3 = arith.constant 3 : index
    %c0_30 = arith.constant 0 : index
    %c0_31 = arith.constant 0 : index
    %27 = vector.load %arg4[%c3, %c0_30, %c0_31] : memref<9x4x128xbf16, #tpu.memory_space<vmem>>, vector<1x4x128xbf16>
    %28 = vector.shape_cast %27 : vector<1x4x128xbf16> to vector<4x128xbf16>
    %cst_32 = arith.constant dense<0.000000e+00> : vector<128x128xf32>
    %29 = tpu.matmul %26, %28, %cst_32 {dimension_numbers = #tpu.dot_dimension_numbers<[1], [0], [0], [1], [0, 0, 1, 1], [], []>} : vector<128x4xbf16>, vector<4x128xbf16>, vector<128x128xf32> -> vector<128x128xf32>
    %30 = arith.addf %23, %29 : vector<128x128xf32>
    %c0_33 = arith.constant 0 : index
    %c0_34 = arith.constant 0 : index
    %c1_35 = arith.constant 1 : index
    %c1_36 = arith.constant 1 : index
    %c0_37 = arith.constant 0 : index
    %31 = vector.load %arg3[%c0_33, %c0_34, %c1_35, %c1_36, %c0_37] : memref<1x1x10x18x4xbf16, #tpu.memory_space<vmem>>, vector<1x1x8x16x4xbf16>
    %32 = vector.shape_cast %31 : vector<1x1x8x16x4xbf16> to vector<8x16x4xbf16>
    %33 = vector.shape_cast %32 : vector<8x16x4xbf16> to vector<128x4xbf16>
    %c4 = arith.constant 4 : index
    %c0_38 = arith.constant 0 : index
    %c0_39 = arith.constant 0 : index
    %34 = vector.load %arg4[%c4, %c0_38, %c0_39] : memref<9x4x128xbf16, #tpu.memory_space<vmem>>, vector<1x4x128xbf16>
    %35 = vector.shape_cast %34 : vector<1x4x128xbf16> to vector<4x128xbf16>
    %cst_40 = arith.constant dense<0.000000e+00> : vector<128x128xf32>
    %36 = tpu.matmul %33, %35, %cst_40 {dimension_numbers = #tpu.dot_dimension_numbers<[1], [0], [0], [1], [0, 0, 1, 1], [], []>} : vector<128x4xbf16>, vector<4x128xbf16>, vector<128x128xf32> -> vector<128x128xf32>
    %37 = arith.addf %30, %36 : vector<128x128xf32>
    %c0_41 = arith.constant 0 : index
    %c0_42 = arith.constant 0 : index
    %c1_43 = arith.constant 1 : index
    %c2_44 = arith.constant 2 : index
    %c0_45 = arith.constant 0 : index
    %38 = vector.load %arg3[%c0_41, %c0_42, %c1_43, %c2_44, %c0_45] : memref<1x1x10x18x4xbf16, #tpu.memory_space<vmem>>, vector<1x1x8x16x4xbf16>
    %39 = vector.shape_cast %38 : vector<1x1x8x16x4xbf16> to vector<8x16x4xbf16>
    %40 = vector.shape_cast %39 : vector<8x16x4xbf16> to vector<128x4xbf16>
    %c5 = arith.constant 5 : index
    %c0_46 = arith.constant 0 : index
    %c0_47 = arith.constant 0 : index
    %41 = vector.load %arg4[%c5, %c0_46, %c0_47] : memref<9x4x128xbf16, #tpu.memory_space<vmem>>, vector<1x4x128xbf16>
    %42 = vector.shape_cast %41 : vector<1x4x128xbf16> to vector<4x128xbf16>
    %cst_48 = arith.constant dense<0.000000e+00> : vector<128x128xf32>
    %43 = tpu.matmul %40, %42, %cst_48 {dimension_numbers = #tpu.dot_dimension_numbers<[1], [0], [0], [1], [0, 0, 1, 1], [], []>} : vector<128x4xbf16>, vector<4x128xbf16>, vector<128x128xf32> -> vector<128x128xf32>
    %44 = arith.addf %37, %43 : vector<128x128xf32>
    %c0_49 = arith.constant 0 : index
    %c0_50 = arith.constant 0 : index
    %c2_51 = arith.constant 2 : index
    %c0_52 = arith.constant 0 : index
    %c0_53 = arith.constant 0 : index
    %45 = vector.load %arg3[%c0_49, %c0_50, %c2_51, %c0_52, %c0_53] : memref<1x1x10x18x4xbf16, #tpu.memory_space<vmem>>, vector<1x1x8x16x4xbf16>
    %46 = vector.shape_cast %45 : vector<1x1x8x16x4xbf16> to vector<8x16x4xbf16>
    %47 = vector.shape_cast %46 : vector<8x16x4xbf16> to vector<128x4xbf16>
    %c6 = arith.constant 6 : index
    %c0_54 = arith.constant 0 : index
    %c0_55 = arith.constant 0 : index
    %48 = vector.load %arg4[%c6, %c0_54, %c0_55] : memref<9x4x128xbf16, #tpu.memory_space<vmem>>, vector<1x4x128xbf16>
    %49 = vector.shape_cast %48 : vector<1x4x128xbf16> to vector<4x128xbf16>
    %cst_56 = arith.constant dense<0.000000e+00> : vector<128x128xf32>
    %50 = tpu.matmul %47, %49, %cst_56 {dimension_numbers = #tpu.dot_dimension_numbers<[1], [0], [0], [1], [0, 0, 1, 1], [], []>} : vector<128x4xbf16>, vector<4x128xbf16>, vector<128x128xf32> -> vector<128x128xf32>
    %51 = arith.addf %44, %50 : vector<128x128xf32>
    %c0_57 = arith.constant 0 : index
    %c0_58 = arith.constant 0 : index
    %c2_59 = arith.constant 2 : index
    %c1_60 = arith.constant 1 : index
    %c0_61 = arith.constant 0 : index
    %52 = vector.load %arg3[%c0_57, %c0_58, %c2_59, %c1_60, %c0_61] : memref<1x1x10x18x4xbf16, #tpu.memory_space<vmem>>, vector<1x1x8x16x4xbf16>
    %53 = vector.shape_cast %52 : vector<1x1x8x16x4xbf16> to vector<8x16x4xbf16>
    %54 = vector.shape_cast %53 : vector<8x16x4xbf16> to vector<128x4xbf16>
    %c7 = arith.constant 7 : index
    %c0_62 = arith.constant 0 : index
    %c0_63 = arith.constant 0 : index
    %55 = vector.load %arg4[%c7, %c0_62, %c0_63] : memref<9x4x128xbf16, #tpu.memory_space<vmem>>, vector<1x4x128xbf16>
    %56 = vector.shape_cast %55 : vector<1x4x128xbf16> to vector<4x128xbf16>
    %cst_64 = arith.constant dense<0.000000e+00> : vector<128x128xf32>
    %57 = tpu.matmul %54, %56, %cst_64 {dimension_numbers = #tpu.dot_dimension_numbers<[1], [0], [0], [1], [0, 0, 1, 1], [], []>} : vector<128x4xbf16>, vector<4x128xbf16>, vector<128x128xf32> -> vector<128x128xf32>
    %58 = arith.addf %51, %57 : vector<128x128xf32>
    %c0_65 = arith.constant 0 : index
    %c0_66 = arith.constant 0 : index
    %c2_67 = arith.constant 2 : index
    %c2_68 = arith.constant 2 : index
    %c0_69 = arith.constant 0 : index
    %59 = vector.load %arg3[%c0_65, %c0_66, %c2_67, %c2_68, %c0_69] : memref<1x1x10x18x4xbf16, #tpu.memory_space<vmem>>, vector<1x1x8x16x4xbf16>
    %60 = vector.shape_cast %59 : vector<1x1x8x16x4xbf16> to vector<8x16x4xbf16>
    %61 = vector.shape_cast %60 : vector<8x16x4xbf16> to vector<128x4xbf16>
    %c8 = arith.constant 8 : index
    %c0_70 = arith.constant 0 : index
    %c0_71 = arith.constant 0 : index
    %62 = vector.load %arg4[%c8, %c0_70, %c0_71] : memref<9x4x128xbf16, #tpu.memory_space<vmem>>, vector<1x4x128xbf16>
    %63 = vector.shape_cast %62 : vector<1x4x128xbf16> to vector<4x128xbf16>
    %cst_72 = arith.constant dense<0.000000e+00> : vector<128x128xf32>
    %64 = tpu.matmul %61, %63, %cst_72 {dimension_numbers = #tpu.dot_dimension_numbers<[1], [0], [0], [1], [0, 0, 1, 1], [], []>} : vector<128x4xbf16>, vector<4x128xbf16>, vector<128x128xf32> -> vector<128x128xf32>
    %65 = arith.addf %58, %64 : vector<128x128xf32>
    %66 = vector.shape_cast %65 : vector<128x128xf32> to vector<8x16x128xf32>
    %c0_73 = arith.constant 0 : index
    %c0_74 = arith.constant 0 : index
    %c0_75 = arith.constant 0 : index
    %c0_76 = arith.constant 0 : index
    %67 = vector.load %arg6[%c0_73, %c0_74, %c0_75, %c0_76] : memref<1x8x16x128xf32, #tpu.memory_space<vmem>>, vector<1x8x16x128xf32>
    %68 = vector.shape_cast %67 : vector<1x8x16x128xf32> to vector<8x16x128xf32>
    %69 = vector.shape_cast %66 : vector<8x16x128xf32> to vector<1x8x16x128xf32>
    tpu.vector_store %arg6[%c0_73, %c0_74, %c0_75, %c0_76], %69 {strides = array<i32>} : memref<1x8x16x128xf32, #tpu.memory_space<vmem>>, vector<1x8x16x128xf32>,
    return
  }
  func.func @transform_0(%arg0: i32, %arg1: i32, %arg2: i32) -> (i32, i32, i32, i32, i32) {
    %c0_i32 = arith.constant 0 : i32
    %c0_i32_0 = arith.constant 0 : i32
    %c0_i32_1 = arith.constant 0 : i32
    %c0_i32_2 = arith.constant 0 : i32
    return %arg0, %arg1, %c0_i32, %c0_i32_0, %c0_i32_1 : i32, i32, i32, i32, i32
  }
  func.func @transform_1(%arg0: i32, %arg1: i32, %arg2: i32) -> (i32, i32, i32) {
    %c0_i32 = arith.constant 0 : i32
    %c0_i32_0 = arith.constant 0 : i32
    %c0_i32_1 = arith.constant 0 : i32
    return %c0_i32, %c0_i32_0, %arg2 : i32, i32, i32
  }
  func.func @transform_2(%arg0: i32, %arg1: i32, %arg2: i32) -> (i32, i32) {
    %c0_i32 = arith.constant 0 : i32
    %c0_i32_0 = arith.constant 0 : i32
    return %c0_i32, %arg2 : i32, i32
  }
  func.func @transform_3(%arg0: i32, %arg1: i32, %arg2: i32) -> (i32, i32, i32, i32) {
    %c0_i32 = arith.constant 0 : i32
    %c0_i32_0 = arith.constant 0 : i32
    return %arg0, %arg1, %c0_i32, %arg2 : i32, i32, i32, i32
  }
}

</mosaic_0001>

<llo_original>
// kernel: conv2d_pallas.1
$region0: #{conv2d_pallas.1}
  #allocation0 [shape = 'u32[]', space=smem, size = 0x4, offset = 0x4, fixed_abs, tag = 'smem constant byte address 0x4 - core index']
  #allocation1 [shape = 'u32[144,128]{1,0:T(1,128)}', space=vmem, size = 0x12000, scoped, tag = 'internal scratch']
  %s0 = inlined_call_operand.vmem [shape: bf16[2,2,10,18,4], index: 0, kind: input, shape index: {}]
  %s1 = inlined_call_operand.vmem [shape: bf16[9,4,128], index: 1, kind: input, shape index: {}]
  %s2 = inlined_call_operand.vmem [shape: f32[1,128], index: 2, kind: input, shape index: {}]
  %s3 = inlined_call_operand.vmem [shape: f32[2,16,16,128], index: 3, kind: output, shape index: {}]
  %s4 = sld [smem:[#allocation0]]
  $region45: #{conv2d_pallas.1} parent=0
    _
  %s6 = ssub.s32 1, %s4
  %s7 = scalar_select 0, %s6, %s4
  loop: start=0, step=1, limit=6
  $region2: #{conv2d_pallas.1} parent=0 // loop_pre_header
    _
  $region3: #{conv2d_pallas.1} parent=0 // loop_header
    %s9 = sphi 0, %s13
    %p10 = scmp.ge.s32.totalorder %s9, 6
    %s16 = sphi 0, %s35
    %s17 = sphi 0, %s31
    %s18 = sphi 0, %s27
    %s19 = sphi 0, %s16
    %s20 = sphi 0, %s17
    %s21 = sphi 0, %s18
    %s22 = sphi 0, %s19
    %s23 = sphi 0, %s20
    %s24 = sphi 0, %s21
    %s40 = sphi 0, %s42
    %s43 = sphi 0, %s40
    %s44 = sphi 0, %s43
    %s60 = sphi 0, %s44
    %s66 = sphi 0, %s68
    %s69 = sphi 0, %s66
    %s70 = sphi 0, %s69
    %s86 = sphi 0, %s70
    %s92 = sphi 0, %s94
    %s95 = sphi 0, %s92
    %s96 = sphi 0, %s95
    %s112 = sphi 0, %s96
    %s122 = sphi 0, %s124
    %s125 = sphi 0, %s122
    %s126 = sphi 0, %s125
    %s142 = sphi 0, %s126
  $region4: #{conv2d_pallas.1} parent=0 // loop_header_branch
    %12 = sbr.rel (%p10) target = $region8
  $region5: #{conv2d_pallas.1} parent=0 // loop_body
    %s14 = ssub.s32 %s9, 1
    %s15 = ssub.s32 %s9, 2
    %s25 = sadd.s32 1, %s18
    %p26 = scmp.ge.s32.totalorder %s25, 1
    %s27 = scalar_select %p26, 0, %s25
    %s28 = sadd.s32 1, %s17
    %s29 = scalar_select %p26, %s28, %s17
    %p30 = scmp.ge.s32.totalorder %s29, 2
    %s31 = scalar_select %p30, 0, %s29
    %s32 = sadd.s32 1, %s16
    %s33 = scalar_select %p30, %s32, %s16
    %p34 = scmp.ge.s32.totalorder %s33, 2
    %s35 = scalar_select %p34, 0, %s33
    %s36 = ssub.s32 %s16, %s35
    %s37 = ssub.s32 %s17, %s31
    %s38 = sor.u32 %s36, %s37
    %p39 = scmp.eq.s32.totalorder %s38, 0
    %s41 = sadd.s32 %s40, 1
    %s42 = scalar_select %p39, %s40, %s41
    %p45 = pneg %p39
    %p46 = scmp.eq.s32.totalorder %s9, 3
    %p47 = por %p45, %p46
    %p48 = scmp.ne.s32.totalorder %s40, %s43
    %p49 = scmp.eq.s32.totalorder %s9, 0
    %p50 = por %p48, %p49
    %p51 = scmp.ne.s32.totalorder %s40, %s43
    %p52 = scmp.eq.s32.totalorder %s14, 3
    %p53 = por %p51, %p52
    %p54 = scmp.ne.s32.totalorder %s43, %s44
    %p55 = scmp.eq.s32.totalorder %s14, 0
    %p56 = por %p54, %p55
    %p57 = scmp.ne.s32.totalorder %s43, %s44
    %p58 = scmp.eq.s32.totalorder %s15, 3
    %p59 = por %p57, %p58
    %p61 = scmp.ne.s32.totalorder %s44, %s60
    %p62 = scmp.eq.s32.totalorder %s15, 0
    %p63 = por %p61, %p62
    %s64 = ssub.s32 %s18, %s27
    %p65 = scmp.eq.s32.totalorder %s64, 0
    %s67 = sadd.s32 %s66, 1
    %s68 = scalar_select %p65, %s66, %s67
    %p71 = pneg %p65
    %p72 = scmp.eq.s32.totalorder %s9, 3
    %p73 = por %p71, %p72
    %p74 = scmp.ne.s32.totalorder %s66, %s69
    %p75 = scmp.eq.s32.totalorder %s9, 0
    %p76 = por %p74, %p75
    %p77 = scmp.ne.s32.totalorder %s66, %s69
    %p78 = scmp.eq.s32.totalorder %s14, 3
    %p79 = por %p77, %p78
    %p80 = scmp.ne.s32.totalorder %s69, %s70
    %p81 = scmp.eq.s32.totalorder %s14, 0
    %p82 = por %p80, %p81
    %p83 = scmp.ne.s32.totalorder %s69, %s70
    %p84 = scmp.eq.s32.totalorder %s15, 3
    %p85 = por %p83, %p84
    %p87 = scmp.ne.s32.totalorder %s70, %s86
    %p88 = scmp.eq.s32.totalorder %s15, 0
    %p89 = por %p87, %p88
    %s90 = ssub.s32 %s18, %s27
    %p91 = scmp.eq.s32.totalorder %s90, 0
    %s93 = sadd.s32 %s92, 1
    %s94 = scalar_select %p91, %s92, %s93
    %p97 = pneg %p91
    %p98 = scmp.eq.s32.totalorder %s9, 3
    %p99 = por %p97, %p98
    %p100 = scmp.ne.s32.totalorder %s92, %s95
    %p101 = scmp.eq.s32.totalorder %s9, 0
    %p102 = por %p100, %p101
    %p103 = scmp.ne.s32.totalorder %s92, %s95
    %p104 = scmp.eq.s32.totalorder %s14, 3
    %p105 = por %p103, %p104
    %p106 = scmp.ne.s32.totalorder %s95, %s96
    %p107 = scmp.eq.s32.totalorder %s14, 0
    %p108 = por %p106, %p107
    %p109 = scmp.ne.s32.totalorder %s95, %s96
    %p110 = scmp.eq.s32.totalorder %s15, 3
    %p111 = por %p109, %p110
    %p113 = scmp.ne.s32.totalorder %s96, %s112
    %p114 = scmp.eq.s32.totalorder %s15, 0
    %p115 = por %p113, %p114
    %s116 = ssub.s32 %s16, %s35
    %s117 = ssub.s32 %s17, %s31
    %s118 = sor.u32 %s116, %s117
    %s119 = ssub.s32 %s18, %s27
    %s120 = sor.u32 %s118, %s119
    %p121 = scmp.eq.s32.totalorder %s120, 0
    %s123 = sadd.s32 %s122, 1
    %s124 = scalar_select %p121, %s122, %s123
    %p127 = pneg %p121
    %p128 = scmp.eq.s32.totalorder %s9, 3
    %p129 = por %p127, %p128
    %p130 = scmp.ne.s32.totalorder %s122, %s125
    %p131 = scmp.eq.s32.totalorder %s9, 0
    %p132 = por %p130, %p131
    %p133 = scmp.ne.s32.totalorder %s122, %s125
    %p134 = scmp.eq.s32.totalorder %s14, 3
    %p135 = por %p133, %p134
    %p136 = scmp.ne.s32.totalorder %s125, %s126
    %p137 = scmp.eq.s32.totalorder %s14, 0
    %p138 = por %p136, %p137
    %p139 = scmp.ne.s32.totalorder %s125, %s126
    %p140 = scmp.eq.s32.totalorder %s15, 3
    %p141 = por %p139, %p140
    %p143 = scmp.ne.s32.totalorder %s126, %s142
    %p144 = scmp.eq.s32.totalorder %s15, 0
    %p145 = por %p143, %p144
    %p146 = scmp.le.s32.totalorder 1, %s9
    %p147 = scmp.lt.s32.totalorder %s9, 5
    %p148 = pnand %p146, %p147
    %p149 = pneg %p148
    // Predicated region
    $region9: #{conv2d_pallas.1} parent=5 // pred_check
      _
    $region10: #{conv2d_pallas.1} parent=5 // pred_check_branch
      %151 = sbr.rel (%p148) target = $region12
    $region11: #{conv2d_pallas.1} parent=5 // pred_region
      %s152 = ssub.s32 %s9, 1
      // Predicated region
      $region13: #{conv2d_pallas.1} parent=11 // pred_check
        %p153 = pneg %p82
      $region14: #{conv2d_pallas.1} parent=11 // pred_check_branch
        %155 = sbr.rel (%p153) target = $region16
      $region15: #{conv2d_pallas.1} parent=11 // pred_region
        %p156 = scmp.lt.s32.totalorder %s21, 0
        %s157 = scalar_select %p156, %s21, 0
        %s158 = smul.addr %s157, 2
        %s159 = scalar_lea.vmem %s1, %s158
      $region16: #{conv2d_pallas.1} parent=11 // pred_fallthru
        _
      // Predicated region
      $region17: #{conv2d_pallas.1} parent=11 // pred_check
        %p160 = pneg %p108
      $region18: #{conv2d_pallas.1} parent=11 // pred_check_branch
        %162 = sbr.rel (%p160) target = $region20
      $region19: #{conv2d_pallas.1} parent=11 // pred_region
        %p163 = scmp.lt.s32.totalorder %s21, 0
        %s164 = scalar_select %p163, %s21, 0
        %s165 = scalar_lea.vmem %s2, %s164
      $region20: #{conv2d_pallas.1} parent=11 // pred_fallthru
        _
    $region12: #{conv2d_pallas.1} parent=5 // pred_fallthru
      _
    %p166 = scmp.lt.s32.totalorder %s9, 4
    // Predicated region
    $region21: #{conv2d_pallas.1} parent=5 // pred_check
      %p167 = pneg %p166
    $region22: #{conv2d_pallas.1} parent=5 // pred_check_branch
      %169 = sbr.rel (%p167) target = $region24
    $region23: #{conv2d_pallas.1} parent=5 // pred_region
      // Predicated region
      $region25: #{conv2d_pallas.1} parent=23 // pred_check
        %p170 = pneg %p50
      $region26: #{conv2d_pallas.1} parent=23 // pred_check_branch
        %172 = sbr.rel (%p170) target = $region28
      $region27: #{conv2d_pallas.1} parent=23 // pred_region
        %p173 = scmp.lt.s32.totalorder %s16, 1
        %s174 = scalar_select %p173, %s16, 1
        %p175 = scmp.lt.s32.totalorder %s17, 1
        %s176 = scalar_select %p175, %s17, 1
        %s177 = smul.addr %s176, 30
        %s178 = smul.addr %s174, 60
        %s179 = sadd.s32 %s177, %s178
        %s180 = smul.addr %s179, 4
        %s181 = scalar_lea.vmem %s0, %s180
      $region28: #{conv2d_pallas.1} parent=23 // pred_fallthru
        _
    $region24: #{conv2d_pallas.1} parent=5 // pred_fallthru
      _
    %p182 = scmp.le.s32.totalorder 1, %s9
    %p183 = scmp.lt.s32.totalorder %s9, 5
    %p184 = pnand %p182, %p183
    %p185 = pneg %p184
    // Predicated region
    $region29: #{conv2d_pallas.1} parent=5 // pred_check
      _
    $region30: #{conv2d_pallas.1} parent=5 // pred_check_branch
      %187 = sbr.rel (%p184) target = $region32
    $region31: #{conv2d_pallas.1} parent=5 // pred_region
      %s188 = ssub.s32 %s9, 1
      %p189 = scmp.lt.s32.totalorder %s19, 1
      %s190 = scalar_select %p189, %s19, 1
      %p191 = scmp.lt.s32.totalorder %s20, 1
      %s192 = scalar_select %p191, %s20, 1
      %s193 = smul.addr %s192, 30
      %s194 = smul.addr %s190, 60
      %s195 = sadd.s32 %s193, %s194
      %s196 = smul.addr %s195, 4
      %s197 = scalar_lea.vmem %s0, %s196
      %p198 = pneg %p56
      %p199 = pneg %p53
      %p200 = scmp.lt.s32.totalorder %s21, 0
      %s201 = scalar_select %p200, %s21, 0
      %s202 = smul.addr %s201, 2
      %s203 = scalar_lea.vmem %s1, %s202
      %p204 = pneg %p82
      %p205 = pneg %p79
      %p206 = scmp.lt.s32.totalorder %s21, 0
      %s207 = scalar_select %p206, %s21, 0
      %s208 = scalar_lea.vmem %s2, %s207
      %p209 = pneg %p108
      %p210 = pneg %p105
      %p211 = pneg %p138
      %p212 = pneg %p135
      %s213 = smul.u32 8, %s20
      %p214 = scmp.lt.s32.totalorder %s19, 1
      %s215 = scalar_select %p214, %s19, 1
      %p216 = scmp.lt.s32.totalorder %s213, 15
      %s217 = scalar_select %p216, %s213, 15
      %p218 = scmp.lt.s32.totalorder %s21, 0
      %s219 = scalar_select %p218, %s21, 0
      %s220 = smul.addr %s217, 2
      %s221 = sadd.s32 %s219, %s220
      %s222 = smul.addr %s215, 32
      %s223 = sadd.s32 %s221, %s222
      %s224 = smul.addr %s223, 8
      %s225 = scalar_lea.vmem %s3, %s224
      %p226 = scmp.lt.s32.totalorder %s19, 1
      %s227 = scalar_select %p226, %s19, 1
      %p228 = scmp.lt.s32.totalorder %s20, 1
      %s229 = scalar_select %p228, %s20, 1
      %s230 = smul.addr %s229, 30
      %s231 = smul.addr %s227, 60
      %s232 = sadd.s32 %s230, %s231
      %s233 = smul.addr %s232, 4
      %s234 = scalar_lea.vmem %s0, %s233
      %p235 = scmp.lt.s32.totalorder %s21, 0
      %s236 = scalar_select %p235, %s21, 0
      %s237 = smul.addr %s236, 2
      %s238 = scalar_lea.vmem %s1, %s237
      %p239 = scmp.lt.s32.totalorder %s21, 0
      %s240 = scalar_select %p239, %s21, 0
      %s241 = scalar_lea.vmem %s2, %s240
      %s242 = smul.u32 8, %s20
      %p243 = scmp.lt.s32.totalorder %s19, 1
      %s244 = scalar_select %p243, %s19, 1
      %p245 = scmp.lt.s32.totalorder %s242, 15
      %s246 = scalar_select %p245, %s242, 15
      %p247 = scmp.lt.s32.totalorder %s21, 0
      %s248 = scalar_select %p247, %s21, 0
      %s249 = smul.addr %s246, 2
      %s250 = sadd.s32 %s248, %s249
      %s251 = smul.addr %s244, 32
      %s252 = sadd.s32 %s250, %s251
      %s253 = smul.addr %s252, 8
      %s254 = scalar_lea.vmem %s3, %s253
      %s255 = smul.u32 8, %s20
      %v257 = vld [vmem:[%s241] sm:$0x1]
      %v259 = vlaneseq
      %v260 = vshrl.u32 %v259, 7
      %v261 = vsub.s32 0, %v260
      %v262 = vrot.slane %v257, %v261
      %v264 = vld [vmem:[%s234] sm:$0xf]
      %v265 = vld [vmem:[%s234 + $0x4] sm:$0xf]
      %v266 = vld [vmem:[%s234 + $0xc] sm:$0xf]
      %v267 = vld [vmem:[%s234 + $0x10] sm:$0xf]
      %v268 = vld [vmem:[%s234 + $0x18] sm:$0xf]
      %v269 = vld [vmem:[%s234 + $0x1c] sm:$0xf]
      %v270 = vld [vmem:[%s234 + $0x24] sm:$0xf]
      %v271 = vld [vmem:[%s234 + $0x28] sm:$0xf]
      %v272 = vld [vmem:[%s234 + $0x30] sm:$0xf]
      %v273 = vld [vmem:[%s234 + $0x34] sm:$0xf]
      %v274 = vld [vmem:[%s234 + $0x3c] sm:$0xf]
      %v275 = vld [vmem:[%s234 + $0x40] sm:$0xf]
      %v276 = vld [vmem:[%s234 + $0x48] sm:$0xf]
      %v277 = vld [vmem:[%s234 + $0x4c] sm:$0xf]
      %v278 = vld [vmem:[%s234 + $0x54] sm:$0xf]
      %v279 = vld [vmem:[%s234 + $0x58] sm:$0xf]
      %v280 = vld [vmem:[%s238] sm:$0x3]
      %v297 = vunpack.c.l.b16 %v264
      %v298 = vunpack.c.l.b16 %v265
      %v299 = vunpack.c.l.b16 %v266
      %v300 = vunpack.c.l.b16 %v267
      %v301 = vunpack.c.l.b16 %v268
      %v302 = vunpack.c.l.b16 %v269
      %v303 = vunpack.c.l.b16 %v270
      %v304 = vunpack.c.l.b16 %v271
      %v305 = vunpack.c.l.b16 %v272
      %v306 = vunpack.c.l.b16 %v273
      %v307 = vunpack.c.l.b16 %v274
      %v308 = vunpack.c.l.b16 %v275
      %v309 = vunpack.c.l.b16 %v276
      %v310 = vunpack.c.l.b16 %v277
      %v311 = vunpack.c.l.b16 %v278
      %v312 = vunpack.c.l.b16 %v279
      %v313 = vpack.c.b16 %v298, %v297
      %v314 = vpack.c.b16 %v300, %v299
      %v315 = vpack.c.b16 %v302, %v301
      %v316 = vpack.c.b16 %v304, %v303
      %v317 = vpack.c.b16 %v306, %v305
      %v318 = vpack.c.b16 %v308, %v307
      %v319 = vpack.c.b16 %v310, %v309
      %v320 = vpack.c.b16 %v312, %v311
      %vm321 = vcmask 31744
      %v323 = vsel %vm321, %v313, 0
      %v326 = vsel %vm321, %v314, 0
      %v329 = vsel %vm321, %v315, 0
      %v332 = vsel %vm321, %v316, 0
      %v335 = vsel %vm321, %v317, 0
      %v338 = vsel %vm321, %v318, 0
      %v341 = vsel %vm321, %v319, 0
      %v344 = vsel %vm321, %v320, 0
      %vm346 = vcmask 1041408
      %v348 = vsel %vm346, %v280, 0
      %350 = vmatprep.subr.bf16.mxu0 0
      %351 = vmatpush1.bf16.msra.mxu0 %v348
      %352 = vmatprep.subr.bf16.mxu0 0
      %353 = vmatpush1.bf16.msra.mxu0 0
      %354 = vmatprep.subr.bf16.mxu0 0
      %355 = vmatpush1.bf16.msra.mxu0 0
      %356 = vmatprep.subr.bf16.mxu0 0
      %357 = vmatpush1.bf16.msra.mxu0 0
      %358 = vmatprep.subr.bf16.mxu0 0
      %359 = vmatpush1.bf16.msra.mxu0 0
      %360 = vmatprep.subr.bf16.mxu0 0
      %361 = vmatpush1.bf16.msra.mxu0 0
      %362 = vmatprep.subr.bf16.mxu0 0
      %363 = vmatpush1.bf16.msra.mxu0 0
      %364 = vmatprep.subr.bf16.mxu0 0
      %365 = vmatpush1.bf16.msra.mxu0 0
      %366 = vmatprep.subr.bf16.mxu0 0
      %367 = vmatpush1.bf16.msra.mxu0 0
      %368 = vmatprep.subr.bf16.mxu0 0
      %369 = vmatpush1.bf16.msra.mxu0 0
      %370 = vmatprep.subr.bf16.mxu0 0
      %371 = vmatpush1.bf16.msra.mxu0 0
      %372 = vmatprep.subr.bf16.mxu0 0
      %373 = vmatpush1.bf16.msra.mxu0 0
      %374 = vmatprep.subr.bf16.mxu0 0
      %375 = vmatpush1.bf16.msra.mxu0 0
      %376 = vmatprep.subr.bf16.mxu0 0
      %377 = vmatpush1.bf16.msra.mxu0 0
      %378 = vmatprep.subr.bf16.mxu0 0
      %379 = vmatpush1.bf16.msra.mxu0 0
      %380 = vmatprep.subr.bf16.mxu0 0
      %381 = vmatpush1.bf16.msra.mxu0 0
      %382 = vmatprep.mubr.bf16.mxu0 0
      %383 = vmatmul.mubr.bf16.gmra.mrb[0].mxu0 %v323
      %v384 = vpop.f32.mrb[0].mxu0
      %v385 = vadd.f32 0.0, %v384
      %v386 = vpop.f32.mrb[0].mxu0
      %v387 = vpop.f32.mrb[0].mxu0
      %v388 = vadd.f32 0.0, %v387
      %v389 = vpop.f32.mrb[0].mxu0
      %390 = vmatprep.mubr.bf16.mxu0 0
      %391 = vmatmul.mubr.bf16.gmra.mrb[0].mxu0 %v326
      %v392 = vpop.f32.mrb[0].mxu0
      %v393 = vadd.f32 0.0, %v392
      %v394 = vpop.f32.mrb[0].mxu0
      %v395 = vpop.f32.mrb[0].mxu0
      %v396 = vadd.f32 0.0, %v395
      %v397 = vpop.f32.mrb[0].mxu0
      %398 = vmatprep.mubr.bf16.mxu0 0
      %399 = vmatmul.mubr.bf16.gmra.mrb[0].mxu0 %v329
      %v400 = vpop.f32.mrb[0].mxu0
      %v401 = vadd.f32 0.0, %v400
      %v402 = vpop.f32.mrb[0].mxu0
      %v403 = vpop.f32.mrb[0].mxu0
      %v404 = vadd.f32 0.0, %v403
      %v405 = vpop.f32.mrb[0].mxu0
      %406 = vmatprep.mubr.bf16.mxu0 0
      %407 = vmatmul.mubr.bf16.gmra.mrb[0].mxu0 %v332
      %v408 = vpop.f32.mrb[0].mxu0
      %v409 = vadd.f32 0.0, %v408
      %v410 = vpop.f32.mrb[0].mxu0
      %v411 = vpop.f32.mrb[0].mxu0
      %v412 = vadd.f32 0.0, %v411
      %v413 = vpop.f32.mrb[0].mxu0
      %414 = vmatprep.mubr.bf16.mxu0 0
      %415 = vmatmul.mubr.bf16.gmra.mrb[0].mxu0 %v335
      %v416 = vpop.f32.mrb[0].mxu0
      %v417 = vadd.f32 0.0, %v416
      %v418 = vpop.f32.mrb[0].mxu0
      %v419 = vpop.f32.mrb[0].mxu0
      %v420 = vadd.f32 0.0, %v419
      %v421 = vpop.f32.mrb[0].mxu0
      %422 = vmatprep.mubr.bf16.mxu0 0
      %423 = vmatmul.mubr.bf16.gmra.mrb[0].mxu0 %v338
      %v424 = vpop.f32.mrb[0].mxu0
      %v425 = vadd.f32 0.0, %v424
      %v426 = vpop.f32.mrb[0].mxu0
      %v427 = vpop.f32.mrb[0].mxu0
      %v428 = vadd.f32 0.0, %v427
      %v429 = vpop.f32.mrb[0].mxu0
      %430 = vmatprep.mubr.bf16.mxu0 0
      %431 = vmatmul.mubr.bf16.gmra.mrb[0].mxu0 %v341
      %v432 = vpop.f32.mrb[0].mxu0
      %v433 = vadd.f32 0.0, %v432
      %v434 = vpop.f32.mrb[0].mxu0
      %v435 = vpop.f32.mrb[0].mxu0
      %v436 = vadd.f32 0.0, %v435
      %v437 = vpop.f32.mrb[0].mxu0
      %438 = vmatprep.mubr.bf16.mxu0 0
      %439 = vmatmul.mubr.bf16.gmra.mrb[0].mxu0 %v344
      %v440 = vpop.f32.mrb[0].mxu0
      %v441 = vadd.f32 0.0, %v440
      %v442 = vpop.f32.mrb[0].mxu0
      %v443 = vpop.f32.mrb[0].mxu0
      %v444 = vadd.f32 0.0, %v443
      %v445 = vpop.f32.mrb[0].mxu0
      %446 = vdwg.mxu0
      %v447 = vadd.f32 %v262, %v385
      %v448 = vadd.f32 %v262, %v388
      %v449 = vadd.f32 %v262, %v393
      %v450 = vadd.f32 %v262, %v396
      %v451 = vadd.f32 %v262, %v401
      %v452 = vadd.f32 %v262, %v404
      %v453 = vadd.f32 %v262, %v409
      %v454 = vadd.f32 %v262, %v412
      %v455 = vadd.f32 %v262, %v417
      %v456 = vadd.f32 %v262, %v420
      %v457 = vadd.f32 %v262, %v425
      %v458 = vadd.f32 %v262, %v428
      %v459 = vadd.f32 %v262, %v433
      %v460 = vadd.f32 %v262, %v436
      %v461 = vadd.f32 %v262, %v441
      %v462 = vadd.f32 %v262, %v444
      %v463 = vld [vmem:[%s234] sm:$0xf]
      %v464 = vld [vmem:[%s234 + $0x4] sm:$0xf]
      %v465 = vld [vmem:[%s234 + $0x8] sm:$0x1]
      %v466 = vld [vmem:[%s234 + $0xc] sm:$0xf]
      %v467 = vld [vmem:[%s234 + $0x10] sm:$0xf]
      %v468 = vld [vmem:[%s234 + $0x14] sm:$0x1]
      %v469 = vld [vmem:[%s234 + $0x18] sm:$0xf]
      %v470 = vld [vmem:[%s234 + $0x1c] sm:$0xf]
      %v471 = vld [vmem:[%s234 + $0x20] sm:$0x1]
      %v472 = vld [vmem:[%s234 + $0x24] sm:$0xf]
      %v473 = vld [vmem:[%s234 + $0x28] sm:$0xf]
      %v474 = vld [vmem:[%s234 + $0x2c] sm:$0x1]
      %v475 = vld [vmem:[%s234 + $0x30] sm:$0xf]
      %v476 = vld [vmem:[%s234 + $0x34] sm:$0xf]
      %v477 = vld [vmem:[%s234 + $0x38] sm:$0x1]
      %v478 = vld [vmem:[%s234 + $0x3c] sm:$0xf]
      %v479 = vld [vmem:[%s234 + $0x40] sm:$0xf]
      %v480 = vld [vmem:[%s234 + $0x44] sm:$0x1]
      %v481 = vld [vmem:[%s234 + $0x48] sm:$0xf]
      %v482 = vld [vmem:[%s234 + $0x4c] sm:$0xf]
      %v483 = vld [vmem:[%s234 + $0x50] sm:$0x1]
      %v484 = vld [vmem:[%s234 + $0x54] sm:$0xf]
      %v485 = vld [vmem:[%s234 + $0x58] sm:$0xf]
      %v486 = vld [vmem:[%s234 + $0x5c] sm:$0x1]
      %vm487 = vsmask.f32 3328
      %vm488 = vsmask.f32 7440
      %vm489 = vmor %vm487, %vm488
      %v491 = vshrl.u32 %v463, 16
      %v493 = vrot.slane %v491, 4
      %v494 = vshll.u32 %v463, 16
      %v496 = vrot.slane %v494, 5
      %v497 = vor.u32 %v493, %v496
      %v498 = vrot.slane %v497, 4
      %v500 = vshll.u32 %v464, 16
      %v502 = vrot.slane %v500, 5
      %v503 = vsel %vm489, %v498, %v502
      %v504 = vshrl.u32 %v464, 16
      %v506 = vrot.slane %v504, 4
      %v507 = vor.u32 %v506, %v502
      %v508 = vrot.slane %v507, 4
      %v510 = vshll.u32 %v465, 16
      %v512 = vrot.slane %v510, 5
      %v513 = vsel %vm489, %v508, %v512
      %v515 = vshrl.u32 %v466, 16
      %v517 = vrot.slane %v515, 4
      %v518 = vshll.u32 %v466, 16
      %v520 = vrot.slane %v518, 5
      %v521 = vor.u32 %v517, %v520
      %v522 = vrot.slane %v521, 4
      %v524 = vshll.u32 %v467, 16
      %v526 = vrot.slane %v524, 5
      %v527 = vsel %vm489, %v522, %v526
      %v528 = vshrl.u32 %v467, 16
      %v530 = vrot.slane %v528, 4
      %v531 = vor.u32 %v530, %v526
      %v532 = vrot.slane %v531, 4
      %v534 = vshll.u32 %v468, 16
      %v536 = vrot.slane %v534, 5
      %v537 = vsel %vm489, %v532, %v536
      %v539 = vshrl.u32 %v469, 16
      %v541 = vrot.slane %v539, 4
      %v542 = vshll.u32 %v469, 16
      %v544 = vrot.slane %v542, 5
      %v545 = vor.u32 %v541, %v544
      %v546 = vrot.slane %v545, 4
      %v548 = vshll.u32 %v470, 16
      %v550 = vrot.slane %v548, 5
      %v551 = vsel %vm489, %v546, %v550
      %v552 = vshrl.u32 %v470, 16
      %v554 = vrot.slane %v552, 4
      %v555 = vor.u32 %v554, %v550
      %v556 = vrot.slane %v555, 4
      %v558 = vshll.u32 %v471, 16
      %v560 = vrot.slane %v558, 5
      %v561 = vsel %vm489, %v556, %v560
      %v563 = vshrl.u32 %v472, 16
      %v565 = vrot.slane %v563, 4
      %v566 = vshll.u32 %v472, 16
      %v568 = vrot.slane %v566, 5
      %v569 = vor.u32 %v565, %v568
      %v570 = vrot.slane %v569, 4
      %v572 = vshll.u32 %v473, 16
      %v574 = vrot.slane %v572, 5
      %v575 = vsel %vm489, %v570, %v574
      %v576 = vshrl.u32 %v473, 16
      %v578 = vrot.slane %v576, 4
      %v579 = vor.u32 %v578, %v574
      %v580 = vrot.slane %v579, 4
      %v582 = vshll.u32 %v474, 16
      %v584 = vrot.slane %v582, 5
      %v585 = vsel %vm489, %v580, %v584
      %v587 = vshrl.u32 %v475, 16
      %v589 = vrot.slane %v587, 4
      %v590 = vshll.u32 %v475, 16
      %v592 = vrot.slane %v590, 5
      %v593 = vor.u32 %v589, %v592
      %v594 = vrot.slane %v593, 4
      %v596 = vshll.u32 %v476, 16
      %v598 = vrot.slane %v596, 5
      %v599 = vsel %vm489, %v594, %v598
      %v600 = vshrl.u32 %v476, 16
      %v602 = vrot.slane %v600, 4
      %v603 = vor.u32 %v602, %v598
      %v604 = vrot.slane %v603, 4
      %v606 = vshll.u32 %v477, 16
      %v608 = vrot.slane %v606, 5
      %v609 = vsel %vm489, %v604, %v608
      %v611 = vshrl.u32 %v478, 16
      %v613 = vrot.slane %v611, 4
      %v614 = vshll.u32 %v478, 16
      %v616 = vrot.slane %v614, 5
      %v617 = vor.u32 %v613, %v616
      %v618 = vrot.slane %v617, 4
      %v620 = vshll.u32 %v479, 16
      %v622 = vrot.slane %v620, 5
      %v623 = vsel %vm489, %v618, %v622
      %v624 = vshrl.u32 %v479, 16
      %v626 = vrot.slane %v624, 4
      %v627 = vor.u32 %v626, %v622
      %v628 = vrot.slane %v627, 4
      %v630 = vshll.u32 %v480, 16
      %v632 = vrot.slane %v630, 5
      %v633 = vsel %vm489, %v628, %v632
      %v635 = vshrl.u32 %v481, 16
      %v637 = vrot.slane %v635, 4
      %v638 = vshll.u32 %v481, 16
      %v640 = vrot.slane %v638, 5
      %v641 = vor.u32 %v637, %v640
      %v642 = vrot.slane %v641, 4
      %v644 = vshll.u32 %v482, 16
      %v646 = vrot.slane %v644, 5
      %v647 = vsel %vm489, %v642, %v646
      %v648 = vshrl.u32 %v482, 16
      %v650 = vrot.slane %v648, 4
      %v651 = vor.u32 %v650, %v646
      %v652 = vrot.slane %v651, 4
      %v654 = vshll.u32 %v483, 16
      %v656 = vrot.slane %v654, 5
      %v657 = vsel %vm489, %v652, %v656
      %v659 = vshrl.u32 %v484, 16
      %v661 = vrot.slane %v659, 4
      %v662 = vshll.u32 %v484, 16
      %v664 = vrot.slane %v662, 5
      %v665 = vor.u32 %v661, %v664
      %v666 = vrot.slane %v665, 4
      %v668 = vshll.u32 %v485, 16
      %v670 = vrot.slane %v668, 5
      %v671 = vsel %vm489, %v666, %v670
      %v672 = vshrl.u32 %v485, 16
      %v674 = vrot.slane %v672, 4
      %v675 = vor.u32 %v674, %v670
      %v676 = vrot.slane %v675, 4
      %v678 = vshll.u32 %v486, 16
      %v680 = vrot.slane %v678, 5
      %v681 = vsel %vm489, %v676, %v680
      %s682 = scalar_lea.vmem %s238, 2
      %v683 = vld [vmem:[%s682] sm:$0x3]
      %v684 = vunpack.c.l.b16 %v503
      %v685 = vunpack.c.l.b16 %v513
      %v686 = vunpack.c.l.b16 %v527
      %v687 = vunpack.c.l.b16 %v537
      %v688 = vunpack.c.l.b16 %v551
      %v689 = vunpack.c.l.b16 %v561
      %v690 = vunpack.c.l.b16 %v575
      %v691 = vunpack.c.l.b16 %v585
      %v692 = vunpack.c.l.b16 %v599
      %v693 = vunpack.c.l.b16 %v609
      %v694 = vunpack.c.l.b16 %v623
      %v695 = vunpack.c.l.b16 %v633
      %v696 = vunpack.c.l.b16 %v647
      %v697 = vunpack.c.l.b16 %v657
      %v698 = vunpack.c.l.b16 %v671
      %v699 = vunpack.c.l.b16 %v681
      %v700 = vpack.c.b16 %v685, %v684
      %v701 = vpack.c.b16 %v687, %v686
      %v702 = vpack.c.b16 %v689, %v688
      %v703 = vpack.c.b16 %v691, %v690
      %v704 = vpack.c.b16 %v693, %v692
      %v705 = vpack.c.b16 %v695, %v694
      %v706 = vpack.c.b16 %v697, %v696
      %v707 = vpack.c.b16 %v699, %v698
      %v709 = vsel %vm321, %v700, 0
      %v712 = vsel %vm321, %v701, 0
      %v715 = vsel %vm321, %v702, 0
      %v718 = vsel %vm321, %v703, 0
      %v721 = vsel %vm321, %v704, 0
      %v724 = vsel %vm321, %v705, 0
      %v727 = vsel %vm321, %v706, 0
      %v730 = vsel %vm321, %v707, 0
      %v733 = vsel %vm346, %v683, 0
      %735 = vmatprep.subr.bf16.mxu0 0
      %736 = vmatpush1.bf16.msra.mxu0 %v733
      %737 = vmatprep.subr.bf16.mxu0 0
      %738 = vmatpush1.bf16.msra.mxu0 0
      %739 = vmatprep.subr.bf16.mxu0 0
      %740 = vmatpush1.bf16.msra.mxu0 0
      %741 = vmatprep.subr.bf16.mxu0 0
      %742 = vmatpush1.bf16.msra.mxu0 0
      %743 = vmatprep.subr.bf16.mxu0 0
      %744 = vmatpush1.bf16.msra.mxu0 0
      %745 = vmatprep.subr.bf16.mxu0 0
      %746 = vmatpush1.bf16.msra.mxu0 0
      %747 = vmatprep.subr.bf16.mxu0 0
      %748 = vmatpush1.bf16.msra.mxu0 0
      %749 = vmatprep.subr.bf16.mxu0 0
      %750 = vmatpush1.bf16.msra.mxu0 0
      %751 = vmatprep.subr.bf16.mxu0 0
      %752 = vmatpush1.bf16.msra.mxu0 0
      %753 = vmatprep.subr.bf16.mxu0 0
      %754 = vmatpush1.bf16.msra.mxu0 0
      %755 = vmatprep.subr.bf16.mxu0 0
      %756 = vmatpush1.bf16.msra.mxu0 0
      %757 = vmatprep.subr.bf16.mxu0 0
      %758 = vmatpush1.bf16.msra.mxu0 0
      %759 = vmatprep.subr.bf16.mxu0 0
      %760 = vmatpush1.bf16.msra.mxu0 0
      %761 = vmatprep.subr.bf16.mxu0 0
      %762 = vmatpush1.bf16.msra.mxu0 0
      %763 = vmatprep.subr.bf16.mxu0 0
      %764 = vmatpush1.bf16.msra.mxu0 0
      %765 = vmatprep.subr.bf16.mxu0 0
      %766 = vmatpush1.bf16.msra.mxu0 0
      %767 = vmatprep.mubr.bf16.mxu0 0
      %768 = vmatmul.mubr.bf16.gmra.mrb[0].mxu0 %v709
      %v769 = vpop.f32.mrb[0].mxu0
      %v770 = vadd.f32 0.0, %v769
      %v771 = vpop.f32.mrb[0].mxu0
      %v772 = vpop.f32.mrb[0].mxu0
      %v773 = vadd.f32 0.0, %v772
      %v774 = vpop.f32.mrb[0].mxu0
      %775 = vmatprep.mubr.bf16.mxu0 0
      %776 = vmatmul.mubr.bf16.gmra.mrb[0].mxu0 %v712
      %v777 = vpop.f32.mrb[0].mxu0
      %v778 = vadd.f32 0.0, %v777
      %v779 = vpop.f32.mrb[0].mxu0
      %v780 = vpop.f32.mrb[0].mxu0
      %v781 = vadd.f32 0.0, %v780
      %v782 = vpop.f32.mrb[0].mxu0
      %783 = vmatprep.mubr.bf16.mxu0 0
      %784 = vmatmul.mubr.bf16.gmra.mrb[0].mxu0 %v715
      %v785 = vpop.f32.mrb[0].mxu0
      %v786 = vadd.f32 0.0, %v785
      %v787 = vpop.f32.mrb[0].mxu0
      %v788 = vpop.f32.mrb[0].mxu0
      %v789 = vadd.f32 0.0, %v788
      %v790 = vpop.f32.mrb[0].mxu0
      %791 = vmatprep.mubr.bf16.mxu0 0
      %792 = vmatmul.mubr.bf16.gmra.mrb[0].mxu0 %v718
      %v793 = vpop.f32.mrb[0].mxu0
      %v794 = vadd.f32 0.0, %v793
      %v795 = vpop.f32.mrb[0].mxu0
      %v796 = vpop.f32.mrb[0].mxu0
      %v797 = vadd.f32 0.0, %v796
      %v798 = vpop.f32.mrb[0].mxu0
      %799 = vmatprep.mubr.bf16.mxu0 0
      %800 = vmatmul.mubr.bf16.gmra.mrb[0].mxu0 %v721
      %v801 = vpop.f32.mrb[0].mxu0
      %v802 = vadd.f32 0.0, %v801
      %v803 = vpop.f32.mrb[0].mxu0
      %v804 = vpop.f32.mrb[0].mxu0
      %v805 = vadd.f32 0.0, %v804
      %v806 = vpop.f32.mrb[0].mxu0
      %807 = vmatprep.mubr.bf16.mxu0 0
      %808 = vmatmul.mubr.bf16.gmra.mrb[0].mxu0 %v724
      %v809 = vpop.f32.mrb[0].mxu0
      %v810 = vadd.f32 0.0, %v809
      %v811 = vpop.f32.mrb[0].mxu0
      %v812 = vpop.f32.mrb[0].mxu0
      %v813 = vadd.f32 0.0, %v812
      %v814 = vpop.f32.mrb[0].mxu0
      %815 = vmatprep.mubr.bf16.mxu0 0
      %816 = vmatmul.mubr.bf16.gmra.mrb[0].mxu0 %v727
      %v817 = vpop.f32.mrb[0].mxu0
      %v818 = vadd.f32 0.0, %v817
      %v819 = vpop.f32.mrb[0].mxu0
      %v820 = vpop.f32.mrb[0].mxu0
      %v821 = vadd.f32 0.0, %v820
      %v822 = vpop.f32.mrb[0].mxu0
      %823 = vmatprep.mubr.bf16.mxu0 0
      %824 = vmatmul.mubr.bf16.gmra.mrb[0].mxu0 %v730
      %v825 = vpop.f32.mrb[0].mxu0
      %v826 = vadd.f32 0.0, %v825
      %v827 = vpop.f32.mrb[0].mxu0
      %v828 = vpop.f32.mrb[0].mxu0
      %v829 = vadd.f32 0.0, %v828
      %v830 = vpop.f32.mrb[0].mxu0
      %831 = vdwg.mxu0
      %v832 = vadd.f32 %v447, %v770
      %v833 = vadd.f32 %v448, %v773
      %v834 = vadd.f32 %v449, %v778
      %v835 = vadd.f32 %v450, %v781
      %v836 = vadd.f32 %v451, %v786
      %v837 = vadd.f32 %v452, %v789
      %v838 = vadd.f32 %v453, %v794
      %v839 = vadd.f32 %v454, %v797
      %v840 = vadd.f32 %v455, %v802
      %v841 = vadd.f32 %v456, %v805
      %v842 = vadd.f32 %v457, %v810
      %v843 = vadd.f32 %v458, %v813
      %v844 = vadd.f32 %v459, %v818
      %v845 = vadd.f32 %v460, %v821
      %v846 = vadd.f32 %v461, %v826
      %v847 = vadd.f32 %v462, %v829
      %v848 = vld [vmem:[%s234] sm:$0xe]
      %v849 = vld [vmem:[%s234 + $0xc] sm:$0xe]
      %v850 = vld [vmem:[%s234 + $0x18] sm:$0xe]
      %v851 = vld [vmem:[%s234 + $0x24] sm:$0xe]
      %v852 = vld [vmem:[%s234 + $0x30] sm:$0xe]
      %v853 = vld [vmem:[%s234 + $0x3c] sm:$0xe]
      %v854 = vld [vmem:[%s234 + $0x48] sm:$0xe]
      %v855 = vld [vmem:[%s234 + $0x54] sm:$0xe]
      %vm880 = vcmask 1042432
      %vm881 = vcmask 1046532
      %vm882 = vmor %vm880, %vm881
      %v883 = vrot.slane %v848, 5
      %v884 = vrot.slane %v883, 4
      %v885 = vrot.slane %v464, 5
      %v886 = vsel %vm882, %v884, %v885
      %v887 = vrot.slane %v885, 4
      %v888 = vrot.slane %v465, 5
      %v889 = vsel %vm882, %v887, %v888
      %v890 = vrot.slane %v849, 5
      %v891 = vrot.slane %v890, 4
      %v892 = vrot.slane %v467, 5
      %v893 = vsel %vm882, %v891, %v892
      %v894 = vrot.slane %v892, 4
      %v895 = vrot.slane %v468, 5
      %v896 = vsel %vm882, %v894, %v895
      %v897 = vrot.slane %v850, 5
      %v898 = vrot.slane %v897, 4
      %v899 = vrot.slane %v470, 5
      %v900 = vsel %vm882, %v898, %v899
      %v901 = vrot.slane %v899, 4
      %v902 = vrot.slane %v471, 5
      %v903 = vsel %vm882, %v901, %v902
      %v904 = vrot.slane %v851, 5
      %v905 = vrot.slane %v904, 4
      %v906 = vrot.slane %v473, 5
      %v907 = vsel %vm882, %v905, %v906
      %v908 = vrot.slane %v906, 4
      %v909 = vrot.slane %v474, 5
      %v910 = vsel %vm882, %v908, %v909
      %v911 = vrot.slane %v852, 5
      %v912 = vrot.slane %v911, 4
      %v913 = vrot.slane %v476, 5
      %v914 = vsel %vm882, %v912, %v913
      %v915 = vrot.slane %v913, 4
      %v916 = vrot.slane %v477, 5
      %v917 = vsel %vm882, %v915, %v916
      %v918 = vrot.slane %v853, 5
      %v919 = vrot.slane %v918, 4
      %v920 = vrot.slane %v479, 5
      %v921 = vsel %vm882, %v919, %v920
      %v922 = vrot.slane %v920, 4
      %v923 = vrot.slane %v480, 5
      %v924 = vsel %vm882, %v922, %v923
      %v925 = vrot.slane %v854, 5
      %v926 = vrot.slane %v925, 4
      %v927 = vrot.slane %v482, 5
      %v928 = vsel %vm882, %v926, %v927
      %v929 = vrot.slane %v927, 4
      %v930 = vrot.slane %v483, 5
      %v931 = vsel %vm882, %v929, %v930
      %v932 = vrot.slane %v855, 5
      %v933 = vrot.slane %v932, 4
      %v934 = vrot.slane %v485, 5
      %v935 = vsel %vm882, %v933, %v934
      %v936 = vrot.slane %v934, 4
      %v937 = vrot.slane %v486, 5
      %v938 = vsel %vm882, %v936, %v937
      %s939 = scalar_lea.vmem %s238, 4
      %v940 = vld [vmem:[%s939] sm:$0x3]
      %v941 = vunpack.c.l.b16 %v886
      %v942 = vunpack.c.l.b16 %v889
      %v943 = vunpack.c.l.b16 %v893
      %v944 = vunpack.c.l.b16 %v896
      %v945 = vunpack.c.l.b16 %v900
      %v946 = vunpack.c.l.b16 %v903
      %v947 = vunpack.c.l.b16 %v907
      %v948 = vunpack.c.l.b16 %v910
      %v949 = vunpack.c.l.b16 %v914
      %v950 = vunpack.c.l.b16 %v917
      %v951 = vunpack.c.l.b16 %v921
      %v952 = vunpack.c.l.b16 %v924
      %v953 = vunpack.c.l.b16 %v928
      %v954 = vunpack.c.l.b16 %v931
      %v955 = vunpack.c.l.b16 %v935
      %v956 = vunpack.c.l.b16 %v938
      %v957 = vpack.c.b16 %v942, %v941
      %v958 = vpack.c.b16 %v944, %v943
      %v959 = vpack.c.b16 %v946, %v945
      %v960 = vpack.c.b16 %v948, %v947
      %v961 = vpack.c.b16 %v950, %v949
      %v962 = vpack.c.b16 %v952, %v951
      %v963 = vpack.c.b16 %v954, %v953
      %v964 = vpack.c.b16 %v956, %v955
      %v966 = vsel %vm321, %v957, 0
      %v969 = vsel %vm321, %v958, 0
      %v972 = vsel %vm321, %v959, 0
      %v975 = vsel %vm321, %v960, 0
      %v978 = vsel %vm321, %v961, 0
      %v981 = vsel %vm321, %v962, 0
      %v984 = vsel %vm321, %v963, 0
      %v987 = vsel %vm321, %v964, 0
      %v990 = vsel %vm346, %v940, 0
      %992 = vmatprep.subr.bf16.mxu0 0
      %993 = vmatpush1.bf16.msra.mxu0 %v990
      %994 = vmatprep.subr.bf16.mxu0 0
      %995 = vmatpush1.bf16.msra.mxu0 0
      %996 = vmatprep.subr.bf16.mxu0 0
      %997 = vmatpush1.bf16.msra.mxu0 0
      %998 = vmatprep.subr.bf16.mxu0 0
      %999 = vmatpush1.bf16.msra.mxu0 0
      %1000 = vmatprep.subr.bf16.mxu0 0
      %1001 = vmatpush1.bf16.msra.mxu0 0
      %1002 = vmatprep.subr.bf16.mxu0 0
      %1003 = vmatpush1.bf16.msra.mxu0 0
      %1004 = vmatprep.subr.bf16.mxu0 0
      %1005 = vmatpush1.bf16.msra.mxu0 0
      %1006 = vmatprep.subr.bf16.mxu0 0
      %1007 = vmatpush1.bf16.msra.mxu0 0
      %1008 = vmatprep.subr.bf16.mxu0 0
      %1009 = vmatpush1.bf16.msra.mxu0 0
      %1010 = vmatprep.subr.bf16.mxu0 0
      %1011 = vmatpush1.bf16.msra.mxu0 0
      %1012 = vmatprep.subr.bf16.mxu0 0
      %1013 = vmatpush1.bf16.msra.mxu0 0
      %1014 = vmatprep.subr.bf16.mxu0 0
      %1015 = vmatpush1.bf16.msra.mxu0 0
      %1016 = vmatprep.subr.bf16.mxu0 0
      %1017 = vmatpush1.bf16.msra.mxu0 0
      %1018 = vmatprep.subr.bf16.mxu0 0
      %1019 = vmatpush1.bf16.msra.mxu0 0
      %1020 = vmatprep.subr.bf16.mxu0 0
      %1021 = vmatpush1.bf16.msra.mxu0 0
      %1022 = vmatprep.subr.bf16.mxu0 0
      %1023 = vmatpush1.bf16.msra.mxu0 0
      %1024 = vmatprep.mubr.bf16.mxu0 0
      %1025 = vmatmul.mubr.bf16.gmra.mrb[0].mxu0 %v966
      %v1026 = vpop.f32.mrb[0].mxu0
      %v1027 = vadd.f32 0.0, %v1026
      %v1028 = vpop.f32.mrb[0].mxu0
      %v1029 = vpop.f32.mrb[0].mxu0
      %v1030 = vadd.f32 0.0, %v1029
      %v1031 = vpop.f32.mrb[0].mxu0
      %1032 = vmatprep.mubr.bf16.mxu0 0
      %1033 = vmatmul.mubr.bf16.gmra.mrb[0].mxu0 %v969
      %v1034 = vpop.f32.mrb[0].mxu0
      %v1035 = vadd.f32 0.0, %v1034
      %v1036 = vpop.f32.mrb[0].mxu0
      %v1037 = vpop.f32.mrb[0].mxu0
      %v1038 = vadd.f32 0.0, %v1037
      %v1039 = vpop.f32.mrb[0].mxu0
      %1040 = vmatprep.mubr.bf16.mxu0 0
      %1041 = vmatmul.mubr.bf16.gmra.mrb[0].mxu0 %v972
      %v1042 = vpop.f32.mrb[0].mxu0
      %v1043 = vadd.f32 0.0, %v1042
      %v1044 = vpop.f32.mrb[0].mxu0
      %v1045 = vpop.f32.mrb[0].mxu0
      %v1046 = vadd.f32 0.0, %v1045
      %v1047 = vpop.f32.mrb[0].mxu0
      %1048 = vmatprep.mubr.bf16.mxu0 0
      %1049 = vmatmul.mubr.bf16.gmra.mrb[0].mxu0 %v975
      %v1050 = vpop.f32.mrb[0].mxu0
      %v1051 = vadd.f32 0.0, %v1050
      %v1052 = vpop.f32.mrb[0].mxu0
      %v1053 = vpop.f32.mrb[0].mxu0
      %v1054 = vadd.f32 0.0, %v1053
      %v1055 = vpop.f32.mrb[0].mxu0
      %1056 = vmatprep.mubr.bf16.mxu0 0
      %1057 = vmatmul.mubr.bf16.gmra.mrb[0].mxu0 %v978
      %v1058 = vpop.f32.mrb[0].mxu0
      %v1059 = vadd.f32 0.0, %v1058
      %v1060 = vpop.f32.mrb[0].mxu0
      %v1061 = vpop.f32.mrb[0].mxu0
      %v1062 = vadd.f32 0.0, %v1061
      %v1063 = vpop.f32.mrb[0].mxu0
      %1064 = vmatprep.mubr.bf16.mxu0 0
      %1065 = vmatmul.mubr.bf16.gmra.mrb[0].mxu0 %v981
      %v1066 = vpop.f32.mrb[0].mxu0
      %v1067 = vadd.f32 0.0, %v1066
      %v1068 = vpop.f32.mrb[0].mxu0
      %v1069 = vpop.f32.mrb[0].mxu0
      %v1070 = vadd.f32 0.0, %v1069
      %v1071 = vpop.f32.mrb[0].mxu0
      %1072 = vmatprep.mubr.bf16.mxu0 0
      %1073 = vmatmul.mubr.bf16.gmra.mrb[0].mxu0 %v984
      %v1074 = vpop.f32.mrb[0].mxu0
      %v1075 = vadd.f32 0.0, %v1074
      %v1076 = vpop.f32.mrb[0].mxu0
      %v1077 = vpop.f32.mrb[0].mxu0
      %v1078 = vadd.f32 0.0, %v1077
      %v1079 = vpop.f32.mrb[0].mxu0
      %1080 = vmatprep.mubr.bf16.mxu0 0
      %1081 = vmatmul.mubr.bf16.gmra.mrb[0].mxu0 %v987
      %v1082 = vpop.f32.mrb[0].mxu0
      %v1083 = vadd.f32 0.0, %v1082
      %v1084 = vpop.f32.mrb[0].mxu0
      %v1085 = vpop.f32.mrb[0].mxu0
      %v1086 = vadd.f32 0.0, %v1085
      %v1087 = vpop.f32.mrb[0].mxu0
      %1088 = vdwg.mxu0
      %v1089 = vadd.f32 %v832, %v1027
      %v1090 = vadd.f32 %v833, %v1030
      %v1091 = vadd.f32 %v834, %v1035
      %v1092 = vadd.f32 %v835, %v1038
      %v1093 = vadd.f32 %v836, %v1043
      %v1094 = vadd.f32 %v837, %v1046
      %v1095 = vadd.f32 %v838, %v1051
      %v1096 = vadd.f32 %v839, %v1054
      %v1097 = vadd.f32 %v840, %v1059
      %v1098 = vadd.f32 %v841, %v1062
      %v1099 = vadd.f32 %v842, %v1067
      %v1100 = vadd.f32 %v843, %v1070
      %v1101 = vadd.f32 %v844, %v1075
      %v1102 = vadd.f32 %v845, %v1078
      %v1103 = vadd.f32 %v846, %v1083
      %v1104 = vadd.f32 %v847, %v1086
      %s1105 = scalar_lea.vmem %s234, 12
      %v1106 = vld [vmem:[%s1105] sm:$0xf]
      %v1107 = vld [vmem:[%s1105 + $0x4] sm:$0xf]
      %v1108 = vld [vmem:[%s1105 + $0xc] sm:$0xf]
      %v1109 = vld [vmem:[%s1105 + $0x10] sm:$0xf]
      %v1110 = vld [vmem:[%s1105 + $0x18] sm:$0xf]
      %v1111 = vld [vmem:[%s1105 + $0x1c] sm:$0xf]
      %v1112 = vld [vmem:[%s1105 + $0x24] sm:$0xf]
      %v1113 = vld [vmem:[%s1105 + $0x28] sm:$0xf]
      %v1114 = vld [vmem:[%s1105 + $0x30] sm:$0xf]
      %v1115 = vld [vmem:[%s1105 + $0x34] sm:$0xf]
      %v1116 = vld [vmem:[%s1105 + $0x3c] sm:$0xf]
      %v1117 = vld [vmem:[%s1105 + $0x40] sm:$0xf]
      %v1118 = vld [vmem:[%s1105 + $0x48] sm:$0xf]
      %v1119 = vld [vmem:[%s1105 + $0x4c] sm:$0xf]
      %v1120 = vld [vmem:[%s1105 + $0x54] sm:$0xf]
      %v1121 = vld [vmem:[%s1105 + $0x58] sm:$0xf]
      %s1122 = scalar_lea.vmem %s238, 6
      %v1123 = vld [vmem:[%s1122] sm:$0x3]
      %v1140 = vunpack.c.l.b16 %v1106
      %v1141 = vunpack.c.l.b16 %v1107
      %v1142 = vunpack.c.l.b16 %v1108
      %v1143 = vunpack.c.l.b16 %v1109
      %v1144 = vunpack.c.l.b16 %v1110
      %v1145 = vunpack.c.l.b16 %v1111
      %v1146 = vunpack.c.l.b16 %v1112
      %v1147 = vunpack.c.l.b16 %v1113
      %v1148 = vunpack.c.l.b16 %v1114
      %v1149 = vunpack.c.l.b16 %v1115
      %v1150 = vunpack.c.l.b16 %v1116
      %v1151 = vunpack.c.l.b16 %v1117
      %v1152 = vunpack.c.l.b16 %v1118
      %v1153 = vunpack.c.l.b16 %v1119
      %v1154 = vunpack.c.l.b16 %v1120
      %v1155 = vunpack.c.l.b16 %v1121
      %v1156 = vpack.c.b16 %v1141, %v1140
      %v1157 = vpack.c.b16 %v1143, %v1142
      %v1158 = vpack.c.b16 %v1145, %v1144
      %v1159 = vpack.c.b16 %v1147, %v1146
      %v1160 = vpack.c.b16 %v1149, %v1148
      %v1161 = vpack.c.b16 %v1151, %v1150
      %v1162 = vpack.c.b16 %v1153, %v1152
      %v1163 = vpack.c.b16 %v1155, %v1154
      %v1165 = vsel %vm321, %v1156, 0
      %v1168 = vsel %vm321, %v1157, 0
      %v1171 = vsel %vm321, %v1158, 0
      %v1174 = vsel %vm321, %v1159, 0
      %v1177 = vsel %vm321, %v1160, 0
      %v1180 = vsel %vm321, %v1161, 0
      %v1183 = vsel %vm321, %v1162, 0
      %v1186 = vsel %vm321, %v1163, 0
      %v1189 = vsel %vm346, %v1123, 0
      %1191 = vmatprep.subr.bf16.mxu0 0
      %1192 = vmatpush1.bf16.msra.mxu0 %v1189
      %1193 = vmatprep.subr.bf16.mxu0 0
      %1194 = vmatpush1.bf16.msra.mxu0 0
      %1195 = vmatprep.subr.bf16.mxu0 0
      %1196 = vmatpush1.bf16.msra.mxu0 0
      %1197 = vmatprep.subr.bf16.mxu0 0
      %1198 = vmatpush1.bf16.msra.mxu0 0
      %1199 = vmatprep.subr.bf16.mxu0 0
      %1200 = vmatpush1.bf16.msra.mxu0 0
      %1201 = vmatprep.subr.bf16.mxu0 0
      %1202 = vmatpush1.bf16.msra.mxu0 0
      %1203 = vmatprep.subr.bf16.mxu0 0
      %1204 = vmatpush1.bf16.msra.mxu0 0
      %1205 = vmatprep.subr.bf16.mxu0 0
      %1206 = vmatpush1.bf16.msra.mxu0 0
      %1207 = vmatprep.subr.bf16.mxu0 0
      %1208 = vmatpush1.bf16.msra.mxu0 0
      %1209 = vmatprep.subr.bf16.mxu0 0
      %1210 = vmatpush1.bf16.msra.mxu0 0
      %1211 = vmatprep.subr.bf16.mxu0 0
      %1212 = vmatpush1.bf16.msra.mxu0 0
      %1213 = vmatprep.subr.bf16.mxu0 0
      %1214 = vmatpush1.bf16.msra.mxu0 0
      %1215 = vmatprep.subr.bf16.mxu0 0
      %1216 = vmatpush1.bf16.msra.mxu0 0
      %1217 = vmatprep.subr.bf16.mxu0 0
      %1218 = vmatpush1.bf16.msra.mxu0 0
      %1219 = vmatprep.subr.bf16.mxu0 0
      %1220 = vmatpush1.bf16.msra.mxu0 0
      %1221 = vmatprep.subr.bf16.mxu0 0
      %1222 = vmatpush1.bf16.msra.mxu0 0
      %1223 = vmatprep.mubr.bf16.mxu0 0
      %1224 = vmatmul.mubr.bf16.gmra.mrb[0].mxu0 %v1165
      %v1225 = vpop.f32.mrb[0].mxu0
      %v1226 = vadd.f32 0.0, %v1225
      %v1227 = vpop.f32.mrb[0].mxu0
      %v1228 = vpop.f32.mrb[0].mxu0
      %v1229 = vadd.f32 0.0, %v1228
      %v1230 = vpop.f32.mrb[0].mxu0
      %1231 = vmatprep.mubr.bf16.mxu0 0
      %1232 = vmatmul.mubr.bf16.gmra.mrb[0].mxu0 %v1168
      %v1233 = vpop.f32.mrb[0].mxu0
      %v1234 = vadd.f32 0.0, %v1233
      %v1235 = vpop.f32.mrb[0].mxu0
      %v1236 = vpop.f32.mrb[0].mxu0
      %v1237 = vadd.f32 0.0, %v1236
      %v1238 = vpop.f32.mrb[0].mxu0
      %1239 = vmatprep.mubr.bf16.mxu0 0
      %1240 = vmatmul.mubr.bf16.gmra.mrb[0].mxu0 %v1171
      %v1241 = vpop.f32.mrb[0].mxu0
      %v1242 = vadd.f32 0.0, %v1241
      %v1243 = vpop.f32.mrb[0].mxu0
      %v1244 = vpop.f32.mrb[0].mxu0
      %v1245 = vadd.f32 0.0, %v1244
      %v1246 = vpop.f32.mrb[0].mxu0
      %1247 = vmatprep.mubr.bf16.mxu0 0
      %1248 = vmatmul.mubr.bf16.gmra.mrb[0].mxu0 %v1174
      %v1249 = vpop.f32.mrb[0].mxu0
      %v1250 = vadd.f32 0.0, %v1249
      %v1251 = vpop.f32.mrb[0].mxu0
      %v1252 = vpop.f32.mrb[0].mxu0
      %v1253 = vadd.f32 0.0, %v1252
      %v1254 = vpop.f32.mrb[0].mxu0
      %1255 = vmatprep.mubr.bf16.mxu0 0
      %1256 = vmatmul.mubr.bf16.gmra.mrb[0].mxu0 %v1177
      %v1257 = vpop.f32.mrb[0].mxu0
      %v1258 = vadd.f32 0.0, %v1257
      %v1259 = vpop.f32.mrb[0].mxu0
      %v1260 = vpop.f32.mrb[0].mxu0
      %v1261 = vadd.f32 0.0, %v1260
      %v1262 = vpop.f32.mrb[0].mxu0
      %1263 = vmatprep.mubr.bf16.mxu0 0
      %1264 = vmatmul.mubr.bf16.gmra.mrb[0].mxu0 %v1180
      %v1265 = vpop.f32.mrb[0].mxu0
      %v1266 = vadd.f32 0.0, %v1265
      %v1267 = vpop.f32.mrb[0].mxu0
      %v1268 = vpop.f32.mrb[0].mxu0
      %v1269 = vadd.f32 0.0, %v1268
      %v1270 = vpop.f32.mrb[0].mxu0
      %1271 = vmatprep.mubr.bf16.mxu0 0
      %1272 = vmatmul.mubr.bf16.gmra.mrb[0].mxu0 %v1183
      %v1273 = vpop.f32.mrb[0].mxu0
      %v1274 = vadd.f32 0.0, %v1273
      %v1275 = vpop.f32.mrb[0].mxu0
      %v1276 = vpop.f32.mrb[0].mxu0
      %v1277 = vadd.f32 0.0, %v1276
      %v1278 = vpop.f32.mrb[0].mxu0
      %1279 = vmatprep.mubr.bf16.mxu0 0
      %1280 = vmatmul.mubr.bf16.gmra.mrb[0].mxu0 %v1186
      %v1281 = vpop.f32.mrb[0].mxu0
      %v1282 = vadd.f32 0.0, %v1281
      %v1283 = vpop.f32.mrb[0].mxu0
      %v1284 = vpop.f32.mrb[0].mxu0
      %v1285 = vadd.f32 0.0, %v1284
      %v1286 = vpop.f32.mrb[0].mxu0
      %1287 = vdwg.mxu0
      %v1288 = vadd.f32 %v1089, %v1226
      %v1289 = vadd.f32 %v1090, %v1229
      %v1290 = vadd.f32 %v1091, %v1234
      %v1291 = vadd.f32 %v1092, %v1237
      %v1292 = vadd.f32 %v1093, %v1242
      %v1293 = vadd.f32 %v1094, %v1245
      %v1294 = vadd.f32 %v1095, %v1250
      %v1295 = vadd.f32 %v1096, %v1253
      %v1296 = vadd.f32 %v1097, %v1258
      %v1297 = vadd.f32 %v1098, %v1261
      %v1298 = vadd.f32 %v1099, %v1266
      %v1299 = vadd.f32 %v1100, %v1269
      %v1300 = vadd.f32 %v1101, %v1274
      %v1301 = vadd.f32 %v1102, %v1277
      %v1302 = vadd.f32 %v1103, %v1282
      %v1303 = vadd.f32 %v1104, %v1285
      %v1304 = vld [vmem:[%s1105] sm:$0xf]
      %v1305 = vld [vmem:[%s1105 + $0x4] sm:$0xf]
      %v1306 = vld [vmem:[%s1105 + $0x8] sm:$0x1]
      %v1307 = vld [vmem:[%s1105 + $0xc] sm:$0xf]
      %v1308 = vld [vmem:[%s1105 + $0x10] sm:$0xf]
      %v1309 = vld [vmem:[%s1105 + $0x14] sm:$0x1]
      %v1310 = vld [vmem:[%s1105 + $0x18] sm:$0xf]
      %v1311 = vld [vmem:[%s1105 + $0x1c] sm:$0xf]
      %v1312 = vld [vmem:[%s1105 + $0x20] sm:$0x1]
      %v1313 = vld [vmem:[%s1105 + $0x24] sm:$0xf]
      %v1314 = vld [vmem:[%s1105 + $0x28] sm:$0xf]
      %v1315 = vld [vmem:[%s1105 + $0x2c] sm:$0x1]
      %v1316 = vld [vmem:[%s1105 + $0x30] sm:$0xf]
      %v1317 = vld [vmem:[%s1105 + $0x34] sm:$0xf]
      %v1318 = vld [vmem:[%s1105 + $0x38] sm:$0x1]
      %v1319 = vld [vmem:[%s1105 + $0x3c] sm:$0xf]
      %v1320 = vld [vmem:[%s1105 + $0x40] sm:$0xf]
      %v1321 = vld [vmem:[%s1105 + $0x44] sm:$0x1]
      %v1322 = vld [vmem:[%s1105 + $0x48] sm:$0xf]
      %v1323 = vld [vmem:[%s1105 + $0x4c] sm:$0xf]
      %v1324 = vld [vmem:[%s1105 + $0x50] sm:$0x1]
      %v1325 = vld [vmem:[%s1105 + $0x54] sm:$0xf]
      %v1326 = vld [vmem:[%s1105 + $0x58] sm:$0xf]
      %v1327 = vld [vmem:[%s1105 + $0x5c] sm:$0x1]
      %v1329 = vshrl.u32 %v1304, 16
      %v1331 = vrot.slane %v1329, 4
      %v1332 = vshll.u32 %v1304, 16
      %v1334 = vrot.slane %v1332, 5
      %v1335 = vor.u32 %v1331, %v1334
      %v1336 = vrot.slane %v1335, 4
      %v1338 = vshll.u32 %v1305, 16
      %v1340 = vrot.slane %v1338, 5
      %v1341 = vsel %vm489, %v1336, %v1340
      %v1342 = vshrl.u32 %v1305, 16
      %v1344 = vrot.slane %v1342, 4
      %v1345 = vor.u32 %v1344, %v1340
      %v1346 = vrot.slane %v1345, 4
      %v1348 = vshll.u32 %v1306, 16
      %v1350 = vrot.slane %v1348, 5
      %v1351 = vsel %vm489, %v1346, %v1350
      %v1353 = vshrl.u32 %v1307, 16
      %v1355 = vrot.slane %v1353, 4
      %v1356 = vshll.u32 %v1307, 16
      %v1358 = vrot.slane %v1356, 5
      %v1359 = vor.u32 %v1355, %v1358
      %v1360 = vrot.slane %v1359, 4
      %v1362 = vshll.u32 %v1308, 16
      %v1364 = vrot.slane %v1362, 5
      %v1365 = vsel %vm489, %v1360, %v1364
      %v1366 = vshrl.u32 %v1308, 16
      %v1368 = vrot.slane %v1366, 4
      %v1369 = vor.u32 %v1368, %v1364
      %v1370 = vrot.slane %v1369, 4
      %v1372 = vshll.u32 %v1309, 16
      %v1374 = vrot.slane %v1372, 5
      %v1375 = vsel %vm489, %v1370, %v1374
      %v1377 = vshrl.u32 %v1310, 16
      %v1379 = vrot.slane %v1377, 4
      %v1380 = vshll.u32 %v1310, 16
      %v1382 = vrot.slane %v1380, 5
      %v1383 = vor.u32 %v1379, %v1382
      %v1384 = vrot.slane %v1383, 4
      %v1386 = vshll.u32 %v1311, 16
      %v1388 = vrot.slane %v1386, 5
      %v1389 = vsel %vm489, %v1384, %v1388
      %v1390 = vshrl.u32 %v1311, 16
      %v1392 = vrot.slane %v1390, 4
      %v1393 = vor.u32 %v1392, %v1388
      %v1394 = vrot.slane %v1393, 4
      %v1396 = vshll.u32 %v1312, 16
      %v1398 = vrot.slane %v1396, 5
      %v1399 = vsel %vm489, %v1394, %v1398
      %v1401 = vshrl.u32 %v1313, 16
      %v1403 = vrot.slane %v1401, 4
      %v1404 = vshll.u32 %v1313, 16
      %v1406 = vrot.slane %v1404, 5
      %v1407 = vor.u32 %v1403, %v1406
      %v1408 = vrot.slane %v1407, 4
      %v1410 = vshll.u32 %v1314, 16
      %v1412 = vrot.slane %v1410, 5
      %v1413 = vsel %vm489, %v1408, %v1412
      %v1414 = vshrl.u32 %v1314, 16
      %v1416 = vrot.slane %v1414, 4
      %v1417 = vor.u32 %v1416, %v1412
      %v1418 = vrot.slane %v1417, 4
      %v1420 = vshll.u32 %v1315, 16
      %v1422 = vrot.slane %v1420, 5
      %v1423 = vsel %vm489, %v1418, %v1422
      %v1425 = vshrl.u32 %v1316, 16
      %v1427 = vrot.slane %v1425, 4
      %v1428 = vshll.u32 %v1316, 16
      %v1430 = vrot.slane %v1428, 5
      %v1431 = vor.u32 %v1427, %v1430
      %v1432 = vrot.slane %v1431, 4
      %v1434 = vshll.u32 %v1317, 16
      %v1436 = vrot.slane %v1434, 5
      %v1437 = vsel %vm489, %v1432, %v1436
      %v1438 = vshrl.u32 %v1317, 16
      %v1440 = vrot.slane %v1438, 4
      %v1441 = vor.u32 %v1440, %v1436
      %v1442 = vrot.slane %v1441, 4
      %v1444 = vshll.u32 %v1318, 16
      %v1446 = vrot.slane %v1444, 5
      %v1447 = vsel %vm489, %v1442, %v1446
      %v1449 = vshrl.u32 %v1319, 16
      %v1451 = vrot.slane %v1449, 4
      %v1452 = vshll.u32 %v1319, 16
      %v1454 = vrot.slane %v1452, 5
      %v1455 = vor.u32 %v1451, %v1454
      %v1456 = vrot.slane %v1455, 4
      %v1458 = vshll.u32 %v1320, 16
      %v1460 = vrot.slane %v1458, 5
      %v1461 = vsel %vm489, %v1456, %v1460
      %v1462 = vshrl.u32 %v1320, 16
      %v1464 = vrot.slane %v1462, 4
      %v1465 = vor.u32 %v1464, %v1460
      %v1466 = vrot.slane %v1465, 4
      %v1468 = vshll.u32 %v1321, 16
      %v1470 = vrot.slane %v1468, 5
      %v1471 = vsel %vm489, %v1466, %v1470
      %v1473 = vshrl.u32 %v1322, 16
      %v1475 = vrot.slane %v1473, 4
      %v1476 = vshll.u32 %v1322, 16
      %v1478 = vrot.slane %v1476, 5
      %v1479 = vor.u32 %v1475, %v1478
      %v1480 = vrot.slane %v1479, 4
      %v1482 = vshll.u32 %v1323, 16
      %v1484 = vrot.slane %v1482, 5
      %v1485 = vsel %vm489, %v1480, %v1484
      %v1486 = vshrl.u32 %v1323, 16
      %v1488 = vrot.slane %v1486, 4
      %v1489 = vor.u32 %v1488, %v1484
      %v1490 = vrot.slane %v1489, 4
      %v1492 = vshll.u32 %v1324, 16
      %v1494 = vrot.slane %v1492, 5
      %v1495 = vsel %vm489, %v1490, %v1494
      %v1497 = vshrl.u32 %v1325, 16
      %v1499 = vrot.slane %v1497, 4
      %v1500 = vshll.u32 %v1325, 16
      %v1502 = vrot.slane %v1500, 5
      %v1503 = vor.u32 %v1499, %v1502
      %v1504 = vrot.slane %v1503, 4
      %v1506 = vshll.u32 %v1326, 16
      %v1508 = vrot.slane %v1506, 5
      %v1509 = vsel %vm489, %v1504, %v1508
      %v1510 = vshrl.u32 %v1326, 16
      %v1512 = vrot.slane %v1510, 4
      %v1513 = vor.u32 %v1512, %v1508
      %v1514 = vrot.slane %v1513, 4
      %v1516 = vshll.u32 %v1327, 16
      %v1518 = vrot.slane %v1516, 5
      %v1519 = vsel %vm489, %v1514, %v1518
      %s1520 = scalar_lea.vmem %s238, 8
      %v1521 = vld [vmem:[%s1520] sm:$0x3]
      %v1522 = vunpack.c.l.b16 %v1341
      %v1523 = vunpack.c.l.b16 %v1351
      %v1524 = vunpack.c.l.b16 %v1365
      %v1525 = vunpack.c.l.b16 %v1375
      %v1526 = vunpack.c.l.b16 %v1389
      %v1527 = vunpack.c.l.b16 %v1399
      %v1528 = vunpack.c.l.b16 %v1413
      %v1529 = vunpack.c.l.b16 %v1423
      %v1530 = vunpack.c.l.b16 %v1437
      %v1531 = vunpack.c.l.b16 %v1447
      %v1532 = vunpack.c.l.b16 %v1461
      %v1533 = vunpack.c.l.b16 %v1471
      %v1534 = vunpack.c.l.b16 %v1485
      %v1535 = vunpack.c.l.b16 %v1495
      %v1536 = vunpack.c.l.b16 %v1509
      %v1537 = vunpack.c.l.b16 %v1519
      %v1538 = vpack.c.b16 %v1523, %v1522
      %v1539 = vpack.c.b16 %v1525, %v1524
      %v1540 = vpack.c.b16 %v1527, %v1526
      %v1541 = vpack.c.b16 %v1529, %v1528
      %v1542 = vpack.c.b16 %v1531, %v1530
      %v1543 = vpack.c.b16 %v1533, %v1532
      %v1544 = vpack.c.b16 %v1535, %v1534
      %v1545 = vpack.c.b16 %v1537, %v1536
      %v1547 = vsel %vm321, %v1538, 0
      %v1550 = vsel %vm321, %v1539, 0
      %v1553 = vsel %vm321, %v1540, 0
      %v1556 = vsel %vm321, %v1541, 0
      %v1559 = vsel %vm321, %v1542, 0
      %v1562 = vsel %vm321, %v1543, 0
      %v1565 = vsel %vm321, %v1544, 0
      %v1568 = vsel %vm321, %v1545, 0
      %v1571 = vsel %vm346, %v1521, 0
      %1573 = vmatprep.subr.bf16.mxu0 0
      %1574 = vmatpush1.bf16.msra.mxu0 %v1571
      %1575 = vmatprep.subr.bf16.mxu0 0
      %1576 = vmatpush1.bf16.msra.mxu0 0
      %1577 = vmatprep.subr.bf16.mxu0 0
      %1578 = vmatpush1.bf16.msra.mxu0 0
      %1579 = vmatprep.subr.bf16.mxu0 0
      %1580 = vmatpush1.bf16.msra.mxu0 0
      %1581 = vmatprep.subr.bf16.mxu0 0
      %1582 = vmatpush1.bf16.msra.mxu0 0
      %1583 = vmatprep.subr.bf16.mxu0 0
      %1584 = vmatpush1.bf16.msra.mxu0 0
      %1585 = vmatprep.subr.bf16.mxu0 0
      %1586 = vmatpush1.bf16.msra.mxu0 0
      %1587 = vmatprep.subr.bf16.mxu0 0
      %1588 = vmatpush1.bf16.msra.mxu0 0
      %1589 = vmatprep.subr.bf16.mxu0 0
      %1590 = vmatpush1.bf16.msra.mxu0 0
      %1591 = vmatprep.subr.bf16.mxu0 0
      %1592 = vmatpush1.bf16.msra.mxu0 0
      %1593 = vmatprep.subr.bf16.mxu0 0
      %1594 = vmatpush1.bf16.msra.mxu0 0
      %1595 = vmatprep.subr.bf16.mxu0 0
      %1596 = vmatpush1.bf16.msra.mxu0 0
      %1597 = vmatprep.subr.bf16.mxu0 0
      %1598 = vmatpush1.bf16.msra.mxu0 0
      %1599 = vmatprep.subr.bf16.mxu0 0
      %1600 = vmatpush1.bf16.msra.mxu0 0
      %1601 = vmatprep.subr.bf16.mxu0 0
      %1602 = vmatpush1.bf16.msra.mxu0 0
      %1603 = vmatprep.subr.bf16.mxu0 0
      %1604 = vmatpush1.bf16.msra.mxu0 0
      %1605 = vmatprep.mubr.bf16.mxu0 0
      %1606 = vmatmul.mubr.bf16.gmra.mrb[0].mxu0 %v1547
      %v1607 = vpop.f32.mrb[0].mxu0
      %v1608 = vadd.f32 0.0, %v1607
      %v1609 = vpop.f32.mrb[0].mxu0
      %v1610 = vpop.f32.mrb[0].mxu0
      %v1611 = vadd.f32 0.0, %v1610
      %v1612 = vpop.f32.mrb[0].mxu0
      %1613 = vmatprep.mubr.bf16.mxu0 0
      %1614 = vmatmul.mubr.bf16.gmra.mrb[0].mxu0 %v1550
      %v1615 = vpop.f32.mrb[0].mxu0
      %v1616 = vadd.f32 0.0, %v1615
      %v1617 = vpop.f32.mrb[0].mxu0
      %v1618 = vpop.f32.mrb[0].mxu0
      %v1619 = vadd.f32 0.0, %v1618
      %v1620 = vpop.f32.mrb[0].mxu0
      %1621 = vmatprep.mubr.bf16.mxu0 0
      %1622 = vmatmul.mubr.bf16.gmra.mrb[0].mxu0 %v1553
      %v1623 = vpop.f32.mrb[0].mxu0
      %v1624 = vadd.f32 0.0, %v1623
      %v1625 = vpop.f32.mrb[0].mxu0
      %v1626 = vpop.f32.mrb[0].mxu0
      %v1627 = vadd.f32 0.0, %v1626
      %v1628 = vpop.f32.mrb[0].mxu0
      %1629 = vmatprep.mubr.bf16.mxu0 0
      %1630 = vmatmul.mubr.bf16.gmra.mrb[0].mxu0 %v1556
      %v1631 = vpop.f32.mrb[0].mxu0
      %v1632 = vadd.f32 0.0, %v1631
      %v1633 = vpop.f32.mrb[0].mxu0
      %v1634 = vpop.f32.mrb[0].mxu0
      %v1635 = vadd.f32 0.0, %v1634
      %v1636 = vpop.f32.mrb[0].mxu0
      %1637 = vmatprep.mubr.bf16.mxu0 0
      %1638 = vmatmul.mubr.bf16.gmra.mrb[0].mxu0 %v1559
      %v1639 = vpop.f32.mrb[0].mxu0
      %v1640 = vadd.f32 0.0, %v1639
      %v1641 = vpop.f32.mrb[0].mxu0
      %v1642 = vpop.f32.mrb[0].mxu0
      %v1643 = vadd.f32 0.0, %v1642
      %v1644 = vpop.f32.mrb[0].mxu0
      %1645 = vmatprep.mubr.bf16.mxu0 0
      %1646 = vmatmul.mubr.bf16.gmra.mrb[0].mxu0 %v1562
      %v1647 = vpop.f32.mrb[0].mxu0
      %v1648 = vadd.f32 0.0, %v1647
      %v1649 = vpop.f32.mrb[0].mxu0
      %v1650 = vpop.f32.mrb[0].mxu0
      %v1651 = vadd.f32 0.0, %v1650
      %v1652 = vpop.f32.mrb[0].mxu0
      %1653 = vmatprep.mubr.bf16.mxu0 0
      %1654 = vmatmul.mubr.bf16.gmra.mrb[0].mxu0 %v1565
      %v1655 = vpop.f32.mrb[0].mxu0
      %v1656 = vadd.f32 0.0, %v1655
      %v1657 = vpop.f32.mrb[0].mxu0
      %v1658 = vpop.f32.mrb[0].mxu0
      %v1659 = vadd.f32 0.0, %v1658
      %v1660 = vpop.f32.mrb[0].mxu0
      %1661 = vmatprep.mubr.bf16.mxu0 0
      %1662 = vmatmul.mubr.bf16.gmra.mrb[0].mxu0 %v1568
      %v1663 = vpop.f32.mrb[0].mxu0
      %v1664 = vadd.f32 0.0, %v1663
      %v1665 = vpop.f32.mrb[0].mxu0
      %v1666 = vpop.f32.mrb[0].mxu0
      %v1667 = vadd.f32 0.0, %v1666
      %v1668 = vpop.f32.mrb[0].mxu0
      %1669 = vdwg.mxu0
      %v1670 = vadd.f32 %v1288, %v1608
      %v1671 = vadd.f32 %v1289, %v1611
      %v1672 = vadd.f32 %v1290, %v1616
      %v1673 = vadd.f32 %v1291, %v1619
      %v1674 = vadd.f32 %v1292, %v1624
      %v1675 = vadd.f32 %v1293, %v1627
      %v1676 = vadd.f32 %v1294, %v1632
      %v1677 = vadd.f32 %v1295, %v1635
      %v1678 = vadd.f32 %v1296, %v1640
      %v1679 = vadd.f32 %v1297, %v1643
      %v1680 = vadd.f32 %v1298, %v1648
      %v1681 = vadd.f32 %v1299, %v1651
      %v1682 = vadd.f32 %v1300, %v1656
      %v1683 = vadd.f32 %v1301, %v1659
      %v1684 = vadd.f32 %v1302, %v1664
      %v1685 = vadd.f32 %v1303, %v1667
      %v1686 = vld [vmem:[%s1105] sm:$0xe]
      %v1687 = vld [vmem:[%s1105 + $0xc] sm:$0xe]
      %v1688 = vld [vmem:[%s1105 + $0x18] sm:$0xe]
      %v1689 = vld [vmem:[%s1105 + $0x24] sm:$0xe]
      %v1690 = vld [vmem:[%s1105 + $0x30] sm:$0xe]
      %v1691 = vld [vmem:[%s1105 + $0x3c] sm:$0xe]
      %v1692 = vld [vmem:[%s1105 + $0x48] sm:$0xe]
      %v1693 = vld [vmem:[%s1105 + $0x54] sm:$0xe]
      %v1718 = vrot.slane %v1686, 5
      %v1719 = vrot.slane %v1718, 4
      %v1720 = vrot.slane %v1305, 5
      %v1721 = vsel %vm882, %v1719, %v1720
      %v1722 = vrot.slane %v1720, 4
      %v1723 = vrot.slane %v1306, 5
      %v1724 = vsel %vm882, %v1722, %v1723
      %v1725 = vrot.slane %v1687, 5
      %v1726 = vrot.slane %v1725, 4
      %v1727 = vrot.slane %v1308, 5
      %v1728 = vsel %vm882, %v1726, %v1727
      %v1729 = vrot.slane %v1727, 4
      %v1730 = vrot.slane %v1309, 5
      %v1731 = vsel %vm882, %v1729, %v1730
      %v1732 = vrot.slane %v1688, 5
      %v1733 = vrot.slane %v1732, 4
      %v1734 = vrot.slane %v1311, 5
      %v1735 = vsel %vm882, %v1733, %v1734
      %v1736 = vrot.slane %v1734, 4
      %v1737 = vrot.slane %v1312, 5
      %v1738 = vsel %vm882, %v1736, %v1737
      %v1739 = vrot.slane %v1689, 5
      %v1740 = vrot.slane %v1739, 4
      %v1741 = vrot.slane %v1314, 5
      %v1742 = vsel %vm882, %v1740, %v1741
      %v1743 = vrot.slane %v1741, 4
      %v1744 = vrot.slane %v1315, 5
      %v1745 = vsel %vm882, %v1743, %v1744
      %v1746 = vrot.slane %v1690, 5
      %v1747 = vrot.slane %v1746, 4
      %v1748 = vrot.slane %v1317, 5
      %v1749 = vsel %vm882, %v1747, %v1748
      %v1750 = vrot.slane %v1748, 4
      %v1751 = vrot.slane %v1318, 5
      %v1752 = vsel %vm882, %v1750, %v1751
      %v1753 = vrot.slane %v1691, 5
      %v1754 = vrot.slane %v1753, 4
      %v1755 = vrot.slane %v1320, 5
      %v1756 = vsel %vm882, %v1754, %v1755
      %v1757 = vrot.slane %v1755, 4
      %v1758 = vrot.slane %v1321, 5
      %v1759 = vsel %vm882, %v1757, %v1758
      %v1760 = vrot.slane %v1692, 5
      %v1761 = vrot.slane %v1760, 4
      %v1762 = vrot.slane %v1323, 5
      %v1763 = vsel %vm882, %v1761, %v1762
      %v1764 = vrot.slane %v1762, 4
      %v1765 = vrot.slane %v1324, 5
      %v1766 = vsel %vm882, %v1764, %v1765
      %v1767 = vrot.slane %v1693, 5
      %v1768 = vrot.slane %v1767, 4
      %v1769 = vrot.slane %v1326, 5
      %v1770 = vsel %vm882, %v1768, %v1769
      %v1771 = vrot.slane %v1769, 4
      %v1772 = vrot.slane %v1327, 5
      %v1773 = vsel %vm882, %v1771, %v1772
      %s1774 = scalar_lea.vmem %s238, 10
      %v1775 = vld [vmem:[%s1774] sm:$0x3]
      %v1776 = vunpack.c.l.b16 %v1721
      %v1777 = vunpack.c.l.b16 %v1724
      %v1778 = vunpack.c.l.b16 %v1728
      %v1779 = vunpack.c.l.b16 %v1731
      %v1780 = vunpack.c.l.b16 %v1735
      %v1781 = vunpack.c.l.b16 %v1738
      %v1782 = vunpack.c.l.b16 %v1742
      %v1783 = vunpack.c.l.b16 %v1745
      %v1784 = vunpack.c.l.b16 %v1749
      %v1785 = vunpack.c.l.b16 %v1752
      %v1786 = vunpack.c.l.b16 %v1756
      %v1787 = vunpack.c.l.b16 %v1759
      %v1788 = vunpack.c.l.b16 %v1763
      %v1789 = vunpack.c.l.b16 %v1766
      %v1790 = vunpack.c.l.b16 %v1770
      %v1791 = vunpack.c.l.b16 %v1773
      %v1792 = vpack.c.b16 %v1777, %v1776
      %v1793 = vpack.c.b16 %v1779, %v1778
      %v1794 = vpack.c.b16 %v1781, %v1780
      %v1795 = vpack.c.b16 %v1783, %v1782
      %v1796 = vpack.c.b16 %v1785, %v1784
      %v1797 = vpack.c.b16 %v1787, %v1786
      %v1798 = vpack.c.b16 %v1789, %v1788
      %v1799 = vpack.c.b16 %v1791, %v1790
      %v1801 = vsel %vm321, %v1792, 0
      %v1804 = vsel %vm321, %v1793, 0
      %v1807 = vsel %vm321, %v1794, 0
      %v1810 = vsel %vm321, %v1795, 0
      %v1813 = vsel %vm321, %v1796, 0
      %v1816 = vsel %vm321, %v1797, 0
      %v1819 = vsel %vm321, %v1798, 0
      %v1822 = vsel %vm321, %v1799, 0
      %v1825 = vsel %vm346, %v1775, 0
      %1827 = vmatprep.subr.bf16.mxu0 0
      %1828 = vmatpush1.bf16.msra.mxu0 %v1825
      %1829 = vmatprep.subr.bf16.mxu0 0
      %1830 = vmatpush1.bf16.msra.mxu0 0
      %1831 = vmatprep.subr.bf16.mxu0 0
      %1832 = vmatpush1.bf16.msra.mxu0 0
      %1833 = vmatprep.subr.bf16.mxu0 0
      %1834 = vmatpush1.bf16.msra.mxu0 0
      %1835 = vmatprep.subr.bf16.mxu0 0
      %1836 = vmatpush1.bf16.msra.mxu0 0
      %1837 = vmatprep.subr.bf16.mxu0 0
      %1838 = vmatpush1.bf16.msra.mxu0 0
      %1839 = vmatprep.subr.bf16.mxu0 0
      %1840 = vmatpush1.bf16.msra.mxu0 0
      %1841 = vmatprep.subr.bf16.mxu0 0
      %1842 = vmatpush1.bf16.msra.mxu0 0
      %1843 = vmatprep.subr.bf16.mxu0 0
      %1844 = vmatpush1.bf16.msra.mxu0 0
      %1845 = vmatprep.subr.bf16.mxu0 0
      %1846 = vmatpush1.bf16.msra.mxu0 0
      %1847 = vmatprep.subr.bf16.mxu0 0
      %1848 = vmatpush1.bf16.msra.mxu0 0
      %1849 = vmatprep.subr.bf16.mxu0 0
      %1850 = vmatpush1.bf16.msra.mxu0 0
      %1851 = vmatprep.subr.bf16.mxu0 0
      %1852 = vmatpush1.bf16.msra.mxu0 0
      %1853 = vmatprep.subr.bf16.mxu0 0
      %1854 = vmatpush1.bf16.msra.mxu0 0
      %1855 = vmatprep.subr.bf16.mxu0 0
      %1856 = vmatpush1.bf16.msra.mxu0 0
      %1857 = vmatprep.subr.bf16.mxu0 0
      %1858 = vmatpush1.bf16.msra.mxu0 0
      %1859 = vmatprep.mubr.bf16.mxu0 0
      %1860 = vmatmul.mubr.bf16.gmra.mrb[0].mxu0 %v1801
      %v1861 = vpop.f32.mrb[0].mxu0
      %v1862 = vadd.f32 0.0, %v1861
      %v1863 = vpop.f32.mrb[0].mxu0
      %v1864 = vpop.f32.mrb[0].mxu0
      %v1865 = vadd.f32 0.0, %v1864
      %v1866 = vpop.f32.mrb[0].mxu0
      %1867 = vmatprep.mubr.bf16.mxu0 0
      %1868 = vmatmul.mubr.bf16.gmra.mrb[0].mxu0 %v1804
      %v1869 = vpop.f32.mrb[0].mxu0
      %v1870 = vadd.f32 0.0, %v1869
      %v1871 = vpop.f32.mrb[0].mxu0
      %v1872 = vpop.f32.mrb[0].mxu0
      %v1873 = vadd.f32 0.0, %v1872
      %v1874 = vpop.f32.mrb[0].mxu0
      %1875 = vmatprep.mubr.bf16.mxu0 0
      %1876 = vmatmul.mubr.bf16.gmra.mrb[0].mxu0 %v1807
      %v1877 = vpop.f32.mrb[0].mxu0
      %v1878 = vadd.f32 0.0, %v1877
      %v1879 = vpop.f32.mrb[0].mxu0
      %v1880 = vpop.f32.mrb[0].mxu0
      %v1881 = vadd.f32 0.0, %v1880
      %v1882 = vpop.f32.mrb[0].mxu0
      %1883 = vmatprep.mubr.bf16.mxu0 0
      %1884 = vmatmul.mubr.bf16.gmra.mrb[0].mxu0 %v1810
      %v1885 = vpop.f32.mrb[0].mxu0
      %v1886 = vadd.f32 0.0, %v1885
      %v1887 = vpop.f32.mrb[0].mxu0
      %v1888 = vpop.f32.mrb[0].mxu0
      %v1889 = vadd.f32 0.0, %v1888
      %v1890 = vpop.f32.mrb[0].mxu0
      %1891 = vmatprep.mubr.bf16.mxu0 0
      %1892 = vmatmul.mubr.bf16.gmra.mrb[0].mxu0 %v1813
      %v1893 = vpop.f32.mrb[0].mxu0
      %v1894 = vadd.f32 0.0, %v1893
      %v1895 = vpop.f32.mrb[0].mxu0
      %v1896 = vpop.f32.mrb[0].mxu0
      %v1897 = vadd.f32 0.0, %v1896
      %v1898 = vpop.f32.mrb[0].mxu0
      %1899 = vmatprep.mubr.bf16.mxu0 0
      %1900 = vmatmul.mubr.bf16.gmra.mrb[0].mxu0 %v1816
      %v1901 = vpop.f32.mrb[0].mxu0
      %v1902 = vadd.f32 0.0, %v1901
      %v1903 = vpop.f32.mrb[0].mxu0
      %v1904 = vpop.f32.mrb[0].mxu0
      %v1905 = vadd.f32 0.0, %v1904
      %v1906 = vpop.f32.mrb[0].mxu0
      %1907 = vmatprep.mubr.bf16.mxu0 0
      %1908 = vmatmul.mubr.bf16.gmra.mrb[0].mxu0 %v1819
      %v1909 = vpop.f32.mrb[0].mxu0
      %v1910 = vadd.f32 0.0, %v1909
      %v1911 = vpop.f32.mrb[0].mxu0
      %v1912 = vpop.f32.mrb[0].mxu0
      %v1913 = vadd.f32 0.0, %v1912
      %v1914 = vpop.f32.mrb[0].mxu0
      %1915 = vmatprep.mubr.bf16.mxu0 0
      %1916 = vmatmul.mubr.bf16.gmra.mrb[0].mxu0 %v1822
      %v1917 = vpop.f32.mrb[0].mxu0
      %v1918 = vadd.f32 0.0, %v1917
      %v1919 = vpop.f32.mrb[0].mxu0
      %v1920 = vpop.f32.mrb[0].mxu0
      %v1921 = vadd.f32 0.0, %v1920
      %v1922 = vpop.f32.mrb[0].mxu0
      %1923 = vdwg.mxu0
      %v1924 = vadd.f32 %v1670, %v1862
      %v1925 = vadd.f32 %v1671, %v1865
      %v1926 = vadd.f32 %v1672, %v1870
      %v1927 = vadd.f32 %v1673, %v1873
      %v1928 = vadd.f32 %v1674, %v1878
      %v1929 = vadd.f32 %v1675, %v1881
      %v1930 = vadd.f32 %v1676, %v1886
      %v1931 = vadd.f32 %v1677, %v1889
      %v1932 = vadd.f32 %v1678, %v1894
      %v1933 = vadd.f32 %v1679, %v1897
      %v1934 = vadd.f32 %v1680, %v1902
      %v1935 = vadd.f32 %v1681, %v1905
      %v1936 = vadd.f32 %v1682, %v1910
      %v1937 = vadd.f32 %v1683, %v1913
      %v1938 = vadd.f32 %v1684, %v1918
      %v1939 = vadd.f32 %v1685, %v1921
      %s1940 = scalar_lea.vmem %s234, 24
      %v1941 = vld [vmem:[%s1940] sm:$0xf]
      %v1942 = vld [vmem:[%s1940 + $0x4] sm:$0xf]
      %v1943 = vld [vmem:[%s1940 + $0xc] sm:$0xf]
      %v1944 = vld [vmem:[%s1940 + $0x10] sm:$0xf]
      %v1945 = vld [vmem:[%s1940 + $0x18] sm:$0xf]
      %v1946 = vld [vmem:[%s1940 + $0x1c] sm:$0xf]
      %v1947 = vld [vmem:[%s1940 + $0x24] sm:$0xf]
      %v1948 = vld [vmem:[%s1940 + $0x28] sm:$0xf]
      %v1949 = vld [vmem:[%s1940 + $0x30] sm:$0xf]
      %v1950 = vld [vmem:[%s1940 + $0x34] sm:$0xf]
      %v1951 = vld [vmem:[%s1940 + $0x3c] sm:$0xf]
      %v1952 = vld [vmem:[%s1940 + $0x40] sm:$0xf]
      %v1953 = vld [vmem:[%s1940 + $0x48] sm:$0xf]
      %v1954 = vld [vmem:[%s1940 + $0x4c] sm:$0xf]
      %v1955 = vld [vmem:[%s1940 + $0x54] sm:$0xf]
      %v1956 = vld [vmem:[%s1940 + $0x58] sm:$0xf]
      %s1957 = scalar_lea.vmem %s238, 12
      %v1958 = vld [vmem:[%s1957] sm:$0x3]
      %v1975 = vunpack.c.l.b16 %v1941
      %v1976 = vunpack.c.l.b16 %v1942
      %v1977 = vunpack.c.l.b16 %v1943
      %v1978 = vunpack.c.l.b16 %v1944
      %v1979 = vunpack.c.l.b16 %v1945
      %v1980 = vunpack.c.l.b16 %v1946
      %v1981 = vunpack.c.l.b16 %v1947
      %v1982 = vunpack.c.l.b16 %v1948
      %v1983 = vunpack.c.l.b16 %v1949
      %v1984 = vunpack.c.l.b16 %v1950
      %v1985 = vunpack.c.l.b16 %v1951
      %v1986 = vunpack.c.l.b16 %v1952
      %v1987 = vunpack.c.l.b16 %v1953
      %v1988 = vunpack.c.l.b16 %v1954
      %v1989 = vunpack.c.l.b16 %v1955
      %v1990 = vunpack.c.l.b16 %v1956
      %v1991 = vpack.c.b16 %v1976, %v1975
      %v1992 = vpack.c.b16 %v1978, %v1977
      %v1993 = vpack.c.b16 %v1980, %v1979
      %v1994 = vpack.c.b16 %v1982, %v1981
      %v1995 = vpack.c.b16 %v1984, %v1983
      %v1996 = vpack.c.b16 %v1986, %v1985
      %v1997 = vpack.c.b16 %v1988, %v1987
      %v1998 = vpack.c.b16 %v1990, %v1989
      %v2000 = vsel %vm321, %v1991, 0
      %v2003 = vsel %vm321, %v1992, 0
      %v2006 = vsel %vm321, %v1993, 0
      %v2009 = vsel %vm321, %v1994, 0
      %v2012 = vsel %vm321, %v1995, 0
      %v2015 = vsel %vm321, %v1996, 0
      %v2018 = vsel %vm321, %v1997, 0
      %v2021 = vsel %vm321, %v1998, 0
      %v2024 = vsel %vm346, %v1958, 0
      %2026 = vmatprep.subr.bf16.mxu0 0
      %2027 = vmatpush1.bf16.msra.mxu0 %v2024
      %2028 = vmatprep.subr.bf16.mxu0 0
      %2029 = vmatpush1.bf16.msra.mxu0 0
      %2030 = vmatprep.subr.bf16.mxu0 0
      %2031 = vmatpush1.bf16.msra.mxu0 0
      %2032 = vmatprep.subr.bf16.mxu0 0
      %2033 = vmatpush1.bf16.msra.mxu0 0
      %2034 = vmatprep.subr.bf16.mxu0 0
      %2035 = vmatpush1.bf16.msra.mxu0 0
      %2036 = vmatprep.subr.bf16.mxu0 0
      %2037 = vmatpush1.bf16.msra.mxu0 0
      %2038 = vmatprep.subr.bf16.mxu0 0
      %2039 = vmatpush1.bf16.msra.mxu0 0
      %2040 = vmatprep.subr.bf16.mxu0 0
      %2041 = vmatpush1.bf16.msra.mxu0 0
      %2042 = vmatprep.subr.bf16.mxu0 0
      %2043 = vmatpush1.bf16.msra.mxu0 0
      %2044 = vmatprep.subr.bf16.mxu0 0
      %2045 = vmatpush1.bf16.msra.mxu0 0
      %2046 = vmatprep.subr.bf16.mxu0 0
      %2047 = vmatpush1.bf16.msra.mxu0 0
      %2048 = vmatprep.subr.bf16.mxu0 0
      %2049 = vmatpush1.bf16.msra.mxu0 0
      %2050 = vmatprep.subr.bf16.mxu0 0
      %2051 = vmatpush1.bf16.msra.mxu0 0
      %2052 = vmatprep.subr.bf16.mxu0 0
      %2053 = vmatpush1.bf16.msra.mxu0 0
      %2054 = vmatprep.subr.bf16.mxu0 0
      %2055 = vmatpush1.bf16.msra.mxu0 0
      %2056 = vmatprep.subr.bf16.mxu0 0
      %2057 = vmatpush1.bf16.msra.mxu0 0
      %2058 = vmatprep.mubr.bf16.mxu0 0
      %2059 = vmatmul.mubr.bf16.gmra.mrb[0].mxu0 %v2000
      %v2060 = vpop.f32.mrb[0].mxu0
      %v2061 = vadd.f32 0.0, %v2060
      %v2062 = vpop.f32.mrb[0].mxu0
      %v2063 = vpop.f32.mrb[0].mxu0
      %v2064 = vadd.f32 0.0, %v2063
      %v2065 = vpop.f32.mrb[0].mxu0
      %2066 = vmatprep.mubr.bf16.mxu0 0
      %2067 = vmatmul.mubr.bf16.gmra.mrb[0].mxu0 %v2003
      %v2068 = vpop.f32.mrb[0].mxu0
      %v2069 = vadd.f32 0.0, %v2068
      %v2070 = vpop.f32.mrb[0].mxu0
      %v2071 = vpop.f32.mrb[0].mxu0
      %v2072 = vadd.f32 0.0, %v2071
      %v2073 = vpop.f32.mrb[0].mxu0
      %2074 = vmatprep.mubr.bf16.mxu0 0
      %2075 = vmatmul.mubr.bf16.gmra.mrb[0].mxu0 %v2006
      %v2076 = vpop.f32.mrb[0].mxu0
      %v2077 = vadd.f32 0.0, %v2076
      %v2078 = vpop.f32.mrb[0].mxu0
      %v2079 = vpop.f32.mrb[0].mxu0
      %v2080 = vadd.f32 0.0, %v2079
      %v2081 = vpop.f32.mrb[0].mxu0
      %2082 = vmatprep.mubr.bf16.mxu0 0
      %2083 = vmatmul.mubr.bf16.gmra.mrb[0].mxu0 %v2009
      %v2084 = vpop.f32.mrb[0].mxu0
      %v2085 = vadd.f32 0.0, %v2084
      %v2086 = vpop.f32.mrb[0].mxu0
      %v2087 = vpop.f32.mrb[0].mxu0
      %v2088 = vadd.f32 0.0, %v2087
      %v2089 = vpop.f32.mrb[0].mxu0
      %2090 = vmatprep.mubr.bf16.mxu0 0
      %2091 = vmatmul.mubr.bf16.gmra.mrb[0].mxu0 %v2012
      %v2092 = vpop.f32.mrb[0].mxu0
      %v2093 = vadd.f32 0.0, %v2092
      %v2094 = vpop.f32.mrb[0].mxu0
      %v2095 = vpop.f32.mrb[0].mxu0
      %v2096 = vadd.f32 0.0, %v2095
      %v2097 = vpop.f32.mrb[0].mxu0
      %2098 = vmatprep.mubr.bf16.mxu0 0
      %2099 = vmatmul.mubr.bf16.gmra.mrb[0].mxu0 %v2015
      %v2100 = vpop.f32.mrb[0].mxu0
      %v2101 = vadd.f32 0.0, %v2100
      %v2102 = vpop.f32.mrb[0].mxu0
      %v2103 = vpop.f32.mrb[0].mxu0
      %v2104 = vadd.f32 0.0, %v2103
      %v2105 = vpop.f32.mrb[0].mxu0
      %2106 = vmatprep.mubr.bf16.mxu0 0
      %2107 = vmatmul.mubr.bf16.gmra.mrb[0].mxu0 %v2018
      %v2108 = vpop.f32.mrb[0].mxu0
      %v2109 = vadd.f32 0.0, %v2108
      %v2110 = vpop.f32.mrb[0].mxu0
      %v2111 = vpop.f32.mrb[0].mxu0
      %v2112 = vadd.f32 0.0, %v2111
      %v2113 = vpop.f32.mrb[0].mxu0
      %2114 = vmatprep.mubr.bf16.mxu0 0
      %2115 = vmatmul.mubr.bf16.gmra.mrb[0].mxu0 %v2021
      %v2116 = vpop.f32.mrb[0].mxu0
      %v2117 = vadd.f32 0.0, %v2116
      %v2118 = vpop.f32.mrb[0].mxu0
      %v2119 = vpop.f32.mrb[0].mxu0
      %v2120 = vadd.f32 0.0, %v2119
      %v2121 = vpop.f32.mrb[0].mxu0
      %2122 = vdwg.mxu0
      %v2123 = vadd.f32 %v1924, %v2061
      %v2124 = vadd.f32 %v1925, %v2064
      %v2125 = vadd.f32 %v1926, %v2069
      %v2126 = vadd.f32 %v1927, %v2072
      %v2127 = vadd.f32 %v1928, %v2077
      %v2128 = vadd.f32 %v1929, %v2080
      %v2129 = vadd.f32 %v1930, %v2085
      %v2130 = vadd.f32 %v1931, %v2088
      %v2131 = vadd.f32 %v1932, %v2093
      %v2132 = vadd.f32 %v1933, %v2096
      %v2133 = vadd.f32 %v1934, %v2101
      %v2134 = vadd.f32 %v1935, %v2104
      %v2135 = vadd.f32 %v1936, %v2109
      %v2136 = vadd.f32 %v1937, %v2112
      %v2137 = vadd.f32 %v1938, %v2117
      %v2138 = vadd.f32 %v1939, %v2120
      %v2139 = vld [vmem:[%s1940] sm:$0xf]
      %v2140 = vld [vmem:[%s1940 + $0x4] sm:$0xf]
      %v2141 = vld [vmem:[%s1940 + $0x8] sm:$0x1]
      %v2142 = vld [vmem:[%s1940 + $0xc] sm:$0xf]
      %v2143 = vld [vmem:[%s1940 + $0x10] sm:$0xf]
      %v2144 = vld [vmem:[%s1940 + $0x14] sm:$0x1]
      %v2145 = vld [vmem:[%s1940 + $0x18] sm:$0xf]
      %v2146 = vld [vmem:[%s1940 + $0x1c] sm:$0xf]
      %v2147 = vld [vmem:[%s1940 + $0x20] sm:$0x1]
      %v2148 = vld [vmem:[%s1940 + $0x24] sm:$0xf]
      %v2149 = vld [vmem:[%s1940 + $0x28] sm:$0xf]
      %v2150 = vld [vmem:[%s1940 + $0x2c] sm:$0x1]
      %v2151 = vld [vmem:[%s1940 + $0x30] sm:$0xf]
      %v2152 = vld [vmem:[%s1940 + $0x34] sm:$0xf]
      %v2153 = vld [vmem:[%s1940 + $0x38] sm:$0x1]
      %v2154 = vld [vmem:[%s1940 + $0x3c] sm:$0xf]
      %v2155 = vld [vmem:[%s1940 + $0x40] sm:$0xf]
      %v2156 = vld [vmem:[%s1940 + $0x44] sm:$0x1]
      %v2157 = vld [vmem:[%s1940 + $0x48] sm:$0xf]
      %v2158 = vld [vmem:[%s1940 + $0x4c] sm:$0xf]
      %v2159 = vld [vmem:[%s1940 + $0x50] sm:$0x1]
      %v2160 = vld [vmem:[%s1940 + $0x54] sm:$0xf]
      %v2161 = vld [vmem:[%s1940 + $0x58] sm:$0xf]
      %v2162 = vld [vmem:[%s1940 + $0x5c] sm:$0x1]
      %v2164 = vshrl.u32 %v2139, 16
      %v2166 = vrot.slane %v2164, 4
      %v2167 = vshll.u32 %v2139, 16
      %v2169 = vrot.slane %v2167, 5
      %v2170 = vor.u32 %v2166, %v2169
      %v2171 = vrot.slane %v2170, 4
      %v2173 = vshll.u32 %v2140, 16
      %v2175 = vrot.slane %v2173, 5
      %v2176 = vsel %vm489, %v2171, %v2175
      %v2177 = vshrl.u32 %v2140, 16
      %v2179 = vrot.slane %v2177, 4
      %v2180 = vor.u32 %v2179, %v2175
      %v2181 = vrot.slane %v2180, 4
      %v2183 = vshll.u32 %v2141, 16
      %v2185 = vrot.slane %v2183, 5
      %v2186 = vsel %vm489, %v2181, %v2185
      %v2188 = vshrl.u32 %v2142, 16
      %v2190 = vrot.slane %v2188, 4
      %v2191 = vshll.u32 %v2142, 16
      %v2193 = vrot.slane %v2191, 5
      %v2194 = vor.u32 %v2190, %v2193
      %v2195 = vrot.slane %v2194, 4
      %v2197 = vshll.u32 %v2143, 16
      %v2199 = vrot.slane %v2197, 5
      %v2200 = vsel %vm489, %v2195, %v2199
      %v2201 = vshrl.u32 %v2143, 16
      %v2203 = vrot.slane %v2201, 4
      %v2204 = vor.u32 %v2203, %v2199
      %v2205 = vrot.slane %v2204, 4
      %v2207 = vshll.u32 %v2144, 16
      %v2209 = vrot.slane %v2207, 5
      %v2210 = vsel %vm489, %v2205, %v2209
      %v2212 = vshrl.u32 %v2145, 16
      %v2214 = vrot.slane %v2212, 4
      %v2215 = vshll.u32 %v2145, 16
      %v2217 = vrot.slane %v2215, 5
      %v2218 = vor.u32 %v2214, %v2217
      %v2219 = vrot.slane %v2218, 4
      %v2221 = vshll.u32 %v2146, 16
      %v2223 = vrot.slane %v2221, 5
      %v2224 = vsel %vm489, %v2219, %v2223
      %v2225 = vshrl.u32 %v2146, 16
      %v2227 = vrot.slane %v2225, 4
      %v2228 = vor.u32 %v2227, %v2223
      %v2229 = vrot.slane %v2228, 4
      %v2231 = vshll.u32 %v2147, 16
      %v2233 = vrot.slane %v2231, 5
      %v2234 = vsel %vm489, %v2229, %v2233
      %v2236 = vshrl.u32 %v2148, 16
      %v2238 = vrot.slane %v2236, 4
      %v2239 = vshll.u32 %v2148, 16
      %v2241 = vrot.slane %v2239, 5
      %v2242 = vor.u32 %v2238, %v2241
      %v2243 = vrot.slane %v2242, 4
      %v2245 = vshll.u32 %v2149, 16
      %v2247 = vrot.slane %v2245, 5
      %v2248 = vsel %vm489, %v2243, %v2247
      %v2249 = vshrl.u32 %v2149, 16
      %v2251 = vrot.slane %v2249, 4
      %v2252 = vor.u32 %v2251, %v2247
      %v2253 = vrot.slane %v2252, 4
      %v2255 = vshll.u32 %v2150, 16
      %v2257 = vrot.slane %v2255, 5
      %v2258 = vsel %vm489, %v2253, %v2257
      %v2260 = vshrl.u32 %v2151, 16
      %v2262 = vrot.slane %v2260, 4
      %v2263 = vshll.u32 %v2151, 16
      %v2265 = vrot.slane %v2263, 5
      %v2266 = vor.u32 %v2262, %v2265
      %v2267 = vrot.slane %v2266, 4
      %v2269 = vshll.u32 %v2152, 16
      %v2271 = vrot.slane %v2269, 5
      %v2272 = vsel %vm489, %v2267, %v2271
      %v2273 = vshrl.u32 %v2152, 16
      %v2275 = vrot.slane %v2273, 4
      %v2276 = vor.u32 %v2275, %v2271
      %v2277 = vrot.slane %v2276, 4
      %v2279 = vshll.u32 %v2153, 16
      %v2281 = vrot.slane %v2279, 5
      %v2282 = vsel %vm489, %v2277, %v2281
      %v2284 = vshrl.u32 %v2154, 16
      %v2286 = vrot.slane %v2284, 4
      %v2287 = vshll.u32 %v2154, 16
      %v2289 = vrot.slane %v2287, 5
      %v2290 = vor.u32 %v2286, %v2289
      %v2291 = vrot.slane %v2290, 4
      %v2293 = vshll.u32 %v2155, 16
      %v2295 = vrot.slane %v2293, 5
      %v2296 = vsel %vm489, %v2291, %v2295
      %v2297 = vshrl.u32 %v2155, 16
      %v2299 = vrot.slane %v2297, 4
      %v2300 = vor.u32 %v2299, %v2295
      %v2301 = vrot.slane %v2300, 4
      %v2303 = vshll.u32 %v2156, 16
      %v2305 = vrot.slane %v2303, 5
      %v2306 = vsel %vm489, %v2301, %v2305
      %v2308 = vshrl.u32 %v2157, 16
      %v2310 = vrot.slane %v2308, 4
      %v2311 = vshll.u32 %v2157, 16
      %v2313 = vrot.slane %v2311, 5
      %v2314 = vor.u32 %v2310, %v2313
      %v2315 = vrot.slane %v2314, 4
      %v2317 = vshll.u32 %v2158, 16
      %v2319 = vrot.slane %v2317, 5
      %v2320 = vsel %vm489, %v2315, %v2319
      %v2321 = vshrl.u32 %v2158, 16
      %v2323 = vrot.slane %v2321, 4
      %v2324 = vor.u32 %v2323, %v2319
      %v2325 = vrot.slane %v2324, 4
      %v2327 = vshll.u32 %v2159, 16
      %v2329 = vrot.slane %v2327, 5
      %v2330 = vsel %vm489, %v2325, %v2329
      %v2332 = vshrl.u32 %v2160, 16
      %v2334 = vrot.slane %v2332, 4
      %v2335 = vshll.u32 %v2160, 16
      %v2337 = vrot.slane %v2335, 5
      %v2338 = vor.u32 %v2334, %v2337
      %v2339 = vrot.slane %v2338, 4
      %v2341 = vshll.u32 %v2161, 16
      %v2343 = vrot.slane %v2341, 5
      %v2344 = vsel %vm489, %v2339, %v2343
      %v2345 = vshrl.u32 %v2161, 16
      %v2347 = vrot.slane %v2345, 4
      %v2348 = vor.u32 %v2347, %v2343
      %v2349 = vrot.slane %v2348, 4
      %v2351 = vshll.u32 %v2162, 16
      %v2353 = vrot.slane %v2351, 5
      %v2354 = vsel %vm489, %v2349, %v2353
      %s2355 = scalar_lea.vmem %s238, 14
      %v2356 = vld [vmem:[%s2355] sm:$0x3]
      %v2357 = vunpack.c.l.b16 %v2176
      %v2358 = vunpack.c.l.b16 %v2186
      %v2359 = vunpack.c.l.b16 %v2200
      %v2360 = vunpack.c.l.b16 %v2210
      %v2361 = vunpack.c.l.b16 %v2224
      %v2362 = vunpack.c.l.b16 %v2234
      %v2363 = vunpack.c.l.b16 %v2248
      %v2364 = vunpack.c.l.b16 %v2258
      %v2365 = vunpack.c.l.b16 %v2272
      %v2366 = vunpack.c.l.b16 %v2282
      %v2367 = vunpack.c.l.b16 %v2296
      %v2368 = vunpack.c.l.b16 %v2306
      %v2369 = vunpack.c.l.b16 %v2320
      %v2370 = vunpack.c.l.b16 %v2330
      %v2371 = vunpack.c.l.b16 %v2344
      %v2372 = vunpack.c.l.b16 %v2354
      %v2373 = vpack.c.b16 %v2358, %v2357
      %v2374 = vpack.c.b16 %v2360, %v2359
      %v2375 = vpack.c.b16 %v2362, %v2361
      %v2376 = vpack.c.b16 %v2364, %v2363
      %v2377 = vpack.c.b16 %v2366, %v2365
      %v2378 = vpack.c.b16 %v2368, %v2367
      %v2379 = vpack.c.b16 %v2370, %v2369
      %v2380 = vpack.c.b16 %v2372, %v2371
      %v2382 = vsel %vm321, %v2373, 0
      %v2385 = vsel %vm321, %v2374, 0
      %v2388 = vsel %vm321, %v2375, 0
      %v2391 = vsel %vm321, %v2376, 0
      %v2394 = vsel %vm321, %v2377, 0
      %v2397 = vsel %vm321, %v2378, 0
      %v2400 = vsel %vm321, %v2379, 0
      %v2403 = vsel %vm321, %v2380, 0
      %v2406 = vsel %vm346, %v2356, 0
      %2408 = vmatprep.subr.bf16.mxu0 0
      %2409 = vmatpush1.bf16.msra.mxu0 %v2406
      %2410 = vmatprep.subr.bf16.mxu0 0
      %2411 = vmatpush1.bf16.msra.mxu0 0
      %2412 = vmatprep.subr.bf16.mxu0 0
      %2413 = vmatpush1.bf16.msra.mxu0 0
      %2414 = vmatprep.subr.bf16.mxu0 0
      %2415 = vmatpush1.bf16.msra.mxu0 0
      %2416 = vmatprep.subr.bf16.mxu0 0
      %2417 = vmatpush1.bf16.msra.mxu0 0
      %2418 = vmatprep.subr.bf16.mxu0 0
      %2419 = vmatpush1.bf16.msra.mxu0 0
      %2420 = vmatprep.subr.bf16.mxu0 0
      %2421 = vmatpush1.bf16.msra.mxu0 0
      %2422 = vmatprep.subr.bf16.mxu0 0
      %2423 = vmatpush1.bf16.msra.mxu0 0
      %2424 = vmatprep.subr.bf16.mxu0 0
      %2425 = vmatpush1.bf16.msra.mxu0 0
      %2426 = vmatprep.subr.bf16.mxu0 0
      %2427 = vmatpush1.bf16.msra.mxu0 0
      %2428 = vmatprep.subr.bf16.mxu0 0
      %2429 = vmatpush1.bf16.msra.mxu0 0
      %2430 = vmatprep.subr.bf16.mxu0 0
      %2431 = vmatpush1.bf16.msra.mxu0 0
      %2432 = vmatprep.subr.bf16.mxu0 0
      %2433 = vmatpush1.bf16.msra.mxu0 0
      %2434 = vmatprep.subr.bf16.mxu0 0
      %2435 = vmatpush1.bf16.msra.mxu0 0
      %2436 = vmatprep.subr.bf16.mxu0 0
      %2437 = vmatpush1.bf16.msra.mxu0 0
      %2438 = vmatprep.subr.bf16.mxu0 0
      %2439 = vmatpush1.bf16.msra.mxu0 0
      %2440 = vmatprep.mubr.bf16.mxu0 0
      %2441 = vmatmul.mubr.bf16.gmra.mrb[0].mxu0 %v2382
      %v2442 = vpop.f32.mrb[0].mxu0
      %v2443 = vadd.f32 0.0, %v2442
      %v2444 = vpop.f32.mrb[0].mxu0
      %v2445 = vpop.f32.mrb[0].mxu0
      %v2446 = vadd.f32 0.0, %v2445
      %v2447 = vpop.f32.mrb[0].mxu0
      %2448 = vmatprep.mubr.bf16.mxu0 0
      %2449 = vmatmul.mubr.bf16.gmra.mrb[0].mxu0 %v2385
      %v2450 = vpop.f32.mrb[0].mxu0
      %v2451 = vadd.f32 0.0, %v2450
      %v2452 = vpop.f32.mrb[0].mxu0
      %v2453 = vpop.f32.mrb[0].mxu0
      %v2454 = vadd.f32 0.0, %v2453
      %v2455 = vpop.f32.mrb[0].mxu0
      %2456 = vmatprep.mubr.bf16.mxu0 0
      %2457 = vmatmul.mubr.bf16.gmra.mrb[0].mxu0 %v2388
      %v2458 = vpop.f32.mrb[0].mxu0
      %v2459 = vadd.f32 0.0, %v2458
      %v2460 = vpop.f32.mrb[0].mxu0
      %v2461 = vpop.f32.mrb[0].mxu0
      %v2462 = vadd.f32 0.0, %v2461
      %v2463 = vpop.f32.mrb[0].mxu0
      %2464 = vmatprep.mubr.bf16.mxu0 0
      %2465 = vmatmul.mubr.bf16.gmra.mrb[0].mxu0 %v2391
      %v2466 = vpop.f32.mrb[0].mxu0
      %v2467 = vadd.f32 0.0, %v2466
      %v2468 = vpop.f32.mrb[0].mxu0
      %v2469 = vpop.f32.mrb[0].mxu0
      %v2470 = vadd.f32 0.0, %v2469
      %v2471 = vpop.f32.mrb[0].mxu0
      %2472 = vmatprep.mubr.bf16.mxu0 0
      %2473 = vmatmul.mubr.bf16.gmra.mrb[0].mxu0 %v2394
      %v2474 = vpop.f32.mrb[0].mxu0
      %v2475 = vadd.f32 0.0, %v2474
      %v2476 = vpop.f32.mrb[0].mxu0
      %v2477 = vpop.f32.mrb[0].mxu0
      %v2478 = vadd.f32 0.0, %v2477
      %v2479 = vpop.f32.mrb[0].mxu0
      %2480 = vmatprep.mubr.bf16.mxu0 0
      %2481 = vmatmul.mubr.bf16.gmra.mrb[0].mxu0 %v2397
      %v2482 = vpop.f32.mrb[0].mxu0
      %v2483 = vadd.f32 0.0, %v2482
      %v2484 = vpop.f32.mrb[0].mxu0
      %v2485 = vpop.f32.mrb[0].mxu0
      %v2486 = vadd.f32 0.0, %v2485
      %v2487 = vpop.f32.mrb[0].mxu0
      %2488 = vmatprep.mubr.bf16.mxu0 0
      %2489 = vmatmul.mubr.bf16.gmra.mrb[0].mxu0 %v2400
      %v2490 = vpop.f32.mrb[0].mxu0
      %v2491 = vadd.f32 0.0, %v2490
      %v2492 = vpop.f32.mrb[0].mxu0
      %v2493 = vpop.f32.mrb[0].mxu0
      %v2494 = vadd.f32 0.0, %v2493
      %v2495 = vpop.f32.mrb[0].mxu0
      %2496 = vmatprep.mubr.bf16.mxu0 0
      %2497 = vmatmul.mubr.bf16.gmra.mrb[0].mxu0 %v2403
      %v2498 = vpop.f32.mrb[0].mxu0
      %v2499 = vadd.f32 0.0, %v2498
      %v2500 = vpop.f32.mrb[0].mxu0
      %v2501 = vpop.f32.mrb[0].mxu0
      %v2502 = vadd.f32 0.0, %v2501
      %v2503 = vpop.f32.mrb[0].mxu0
      %2504 = vdwg.mxu0
      %v2505 = vadd.f32 %v2123, %v2443
      %v2506 = vadd.f32 %v2124, %v2446
      %v2507 = vadd.f32 %v2125, %v2451
      %v2508 = vadd.f32 %v2126, %v2454
      %v2509 = vadd.f32 %v2127, %v2459
      %v2510 = vadd.f32 %v2128, %v2462
      %v2511 = vadd.f32 %v2129, %v2467
      %v2512 = vadd.f32 %v2130, %v2470
      %v2513 = vadd.f32 %v2131, %v2475
      %v2514 = vadd.f32 %v2132, %v2478
      %v2515 = vadd.f32 %v2133, %v2483
      %v2516 = vadd.f32 %v2134, %v2486
      %v2517 = vadd.f32 %v2135, %v2491
      %v2518 = vadd.f32 %v2136, %v2494
      %v2519 = vadd.f32 %v2137, %v2499
      %v2520 = vadd.f32 %v2138, %v2502
      %v2521 = vld [vmem:[%s1940] sm:$0xe]
      %v2522 = vld [vmem:[%s1940 + $0xc] sm:$0xe]
      %v2523 = vld [vmem:[%s1940 + $0x18] sm:$0xe]
      %v2524 = vld [vmem:[%s1940 + $0x24] sm:$0xe]
      %v2525 = vld [vmem:[%s1940 + $0x30] sm:$0xe]
      %v2526 = vld [vmem:[%s1940 + $0x3c] sm:$0xe]
      %v2527 = vld [vmem:[%s1940 + $0x48] sm:$0xe]
      %v2528 = vld [vmem:[%s1940 + $0x54] sm:$0xe]
      %v2553 = vrot.slane %v2521, 5
      %v2554 = vrot.slane %v2553, 4
      %v2555 = vrot.slane %v2140, 5
      %v2556 = vsel %vm882, %v2554, %v2555
      %v2557 = vrot.slane %v2555, 4
      %v2558 = vrot.slane %v2141, 5
      %v2559 = vsel %vm882, %v2557, %v2558
      %v2560 = vrot.slane %v2522, 5
      %v2561 = vrot.slane %v2560, 4
      %v2562 = vrot.slane %v2143, 5
      %v2563 = vsel %vm882, %v2561, %v2562
      %v2564 = vrot.slane %v2562, 4
      %v2565 = vrot.slane %v2144, 5
      %v2566 = vsel %vm882, %v2564, %v2565
      %v2567 = vrot.slane %v2523, 5
      %v2568 = vrot.slane %v2567, 4
      %v2569 = vrot.slane %v2146, 5
      %v2570 = vsel %vm882, %v2568, %v2569
      %v2571 = vrot.slane %v2569, 4
      %v2572 = vrot.slane %v2147, 5
      %v2573 = vsel %vm882, %v2571, %v2572
      %v2574 = vrot.slane %v2524, 5
      %v2575 = vrot.slane %v2574, 4
      %v2576 = vrot.slane %v2149, 5
      %v2577 = vsel %vm882, %v2575, %v2576
      %v2578 = vrot.slane %v2576, 4
      %v2579 = vrot.slane %v2150, 5
      %v2580 = vsel %vm882, %v2578, %v2579
      %v2581 = vrot.slane %v2525, 5
      %v2582 = vrot.slane %v2581, 4
      %v2583 = vrot.slane %v2152, 5
      %v2584 = vsel %vm882, %v2582, %v2583
      %v2585 = vrot.slane %v2583, 4
      %v2586 = vrot.slane %v2153, 5
      %v2587 = vsel %vm882, %v2585, %v2586
      %v2588 = vrot.slane %v2526, 5
      %v2589 = vrot.slane %v2588, 4
      %v2590 = vrot.slane %v2155, 5
      %v2591 = vsel %vm882, %v2589, %v2590
      %v2592 = vrot.slane %v2590, 4
      %v2593 = vrot.slane %v2156, 5
      %v2594 = vsel %vm882, %v2592, %v2593
      %v2595 = vrot.slane %v2527, 5
      %v2596 = vrot.slane %v2595, 4
      %v2597 = vrot.slane %v2158, 5
      %v2598 = vsel %vm882, %v2596, %v2597
      %v2599 = vrot.slane %v2597, 4
      %v2600 = vrot.slane %v2159, 5
      %v2601 = vsel %vm882, %v2599, %v2600
      %v2602 = vrot.slane %v2528, 5
      %v2603 = vrot.slane %v2602, 4
      %v2604 = vrot.slane %v2161, 5
      %v2605 = vsel %vm882, %v2603, %v2604
      %v2606 = vrot.slane %v2604, 4
      %v2607 = vrot.slane %v2162, 5
      %v2608 = vsel %vm882, %v2606, %v2607
      %s2609 = scalar_lea.vmem %s238, 16
      %v2610 = vld [vmem:[%s2609] sm:$0x3]
      %v2611 = vunpack.c.l.b16 %v2556
      %v2612 = vunpack.c.l.b16 %v2559
      %v2613 = vunpack.c.l.b16 %v2563
      %v2614 = vunpack.c.l.b16 %v2566
      %v2615 = vunpack.c.l.b16 %v2570
      %v2616 = vunpack.c.l.b16 %v2573
      %v2617 = vunpack.c.l.b16 %v2577
      %v2618 = vunpack.c.l.b16 %v2580
      %v2619 = vunpack.c.l.b16 %v2584
      %v2620 = vunpack.c.l.b16 %v2587
      %v2621 = vunpack.c.l.b16 %v2591
      %v2622 = vunpack.c.l.b16 %v2594
      %v2623 = vunpack.c.l.b16 %v2598
      %v2624 = vunpack.c.l.b16 %v2601
      %v2625 = vunpack.c.l.b16 %v2605
      %v2626 = vunpack.c.l.b16 %v2608
      %v2627 = vpack.c.b16 %v2612, %v2611
      %v2628 = vpack.c.b16 %v2614, %v2613
      %v2629 = vpack.c.b16 %v2616, %v2615
      %v2630 = vpack.c.b16 %v2618, %v2617
      %v2631 = vpack.c.b16 %v2620, %v2619
      %v2632 = vpack.c.b16 %v2622, %v2621
      %v2633 = vpack.c.b16 %v2624, %v2623
      %v2634 = vpack.c.b16 %v2626, %v2625
      %v2636 = vsel %vm321, %v2627, 0
      %v2639 = vsel %vm321, %v2628, 0
      %v2642 = vsel %vm321, %v2629, 0
      %v2645 = vsel %vm321, %v2630, 0
      %v2648 = vsel %vm321, %v2631, 0
      %v2651 = vsel %vm321, %v2632, 0
      %v2654 = vsel %vm321, %v2633, 0
      %v2657 = vsel %vm321, %v2634, 0
      %v2660 = vsel %vm346, %v2610, 0
      %2662 = vmatprep.subr.bf16.mxu0 0
      %2663 = vmatpush1.bf16.msra.mxu0 %v2660
      %2664 = vmatprep.subr.bf16.mxu0 0
      %2665 = vmatpush1.bf16.msra.mxu0 0
      %2666 = vmatprep.subr.bf16.mxu0 0
      %2667 = vmatpush1.bf16.msra.mxu0 0
      %2668 = vmatprep.subr.bf16.mxu0 0
      %2669 = vmatpush1.bf16.msra.mxu0 0
      %2670 = vmatprep.subr.bf16.mxu0 0
      %2671 = vmatpush1.bf16.msra.mxu0 0
      %2672 = vmatprep.subr.bf16.mxu0 0
      %2673 = vmatpush1.bf16.msra.mxu0 0
      %2674 = vmatprep.subr.bf16.mxu0 0
      %2675 = vmatpush1.bf16.msra.mxu0 0
      %2676 = vmatprep.subr.bf16.mxu0 0
      %2677 = vmatpush1.bf16.msra.mxu0 0
      %2678 = vmatprep.subr.bf16.mxu0 0
      %2679 = vmatpush1.bf16.msra.mxu0 0
      %2680 = vmatprep.subr.bf16.mxu0 0
      %2681 = vmatpush1.bf16.msra.mxu0 0
      %2682 = vmatprep.subr.bf16.mxu0 0
      %2683 = vmatpush1.bf16.msra.mxu0 0
      %2684 = vmatprep.subr.bf16.mxu0 0
      %2685 = vmatpush1.bf16.msra.mxu0 0
      %2686 = vmatprep.subr.bf16.mxu0 0
      %2687 = vmatpush1.bf16.msra.mxu0 0
      %2688 = vmatprep.subr.bf16.mxu0 0
      %2689 = vmatpush1.bf16.msra.mxu0 0
      %2690 = vmatprep.subr.bf16.mxu0 0
      %2691 = vmatpush1.bf16.msra.mxu0 0
      %2692 = vmatprep.subr.bf16.mxu0 0
      %2693 = vmatpush1.bf16.msra.mxu0 0
      %2694 = vmatprep.mubr.bf16.mxu0 0
      %2695 = vmatmul.mubr.bf16.gmra.mrb[0].mxu0 %v2636
      %v2696 = vpop.f32.mrb[0].mxu0
      %v2697 = vadd.f32 0.0, %v2696
      %v2698 = vpop.f32.mrb[0].mxu0
      %v2699 = vpop.f32.mrb[0].mxu0
      %v2700 = vadd.f32 0.0, %v2699
      %v2701 = vpop.f32.mrb[0].mxu0
      %2702 = vmatprep.mubr.bf16.mxu0 0
      %2703 = vmatmul.mubr.bf16.gmra.mrb[0].mxu0 %v2639
      %v2704 = vpop.f32.mrb[0].mxu0
      %v2705 = vadd.f32 0.0, %v2704
      %v2706 = vpop.f32.mrb[0].mxu0
      %v2707 = vpop.f32.mrb[0].mxu0
      %v2708 = vadd.f32 0.0, %v2707
      %v2709 = vpop.f32.mrb[0].mxu0
      %2710 = vmatprep.mubr.bf16.mxu0 0
      %2711 = vmatmul.mubr.bf16.gmra.mrb[0].mxu0 %v2642
      %v2712 = vpop.f32.mrb[0].mxu0
      %v2713 = vadd.f32 0.0, %v2712
      %v2714 = vpop.f32.mrb[0].mxu0
      %v2715 = vpop.f32.mrb[0].mxu0
      %v2716 = vadd.f32 0.0, %v2715
      %v2717 = vpop.f32.mrb[0].mxu0
      %2718 = vmatprep.mubr.bf16.mxu0 0
      %2719 = vmatmul.mubr.bf16.gmra.mrb[0].mxu0 %v2645
      %v2720 = vpop.f32.mrb[0].mxu0
      %v2721 = vadd.f32 0.0, %v2720
      %v2722 = vpop.f32.mrb[0].mxu0
      %v2723 = vpop.f32.mrb[0].mxu0
      %v2724 = vadd.f32 0.0, %v2723
      %v2725 = vpop.f32.mrb[0].mxu0
      %2726 = vmatprep.mubr.bf16.mxu0 0
      %2727 = vmatmul.mubr.bf16.gmra.mrb[0].mxu0 %v2648
      %v2728 = vpop.f32.mrb[0].mxu0
      %v2729 = vadd.f32 0.0, %v2728
      %v2730 = vpop.f32.mrb[0].mxu0
      %v2731 = vpop.f32.mrb[0].mxu0
      %v2732 = vadd.f32 0.0, %v2731
      %v2733 = vpop.f32.mrb[0].mxu0
      %2734 = vmatprep.mubr.bf16.mxu0 0
      %2735 = vmatmul.mubr.bf16.gmra.mrb[0].mxu0 %v2651
      %v2736 = vpop.f32.mrb[0].mxu0
      %v2737 = vadd.f32 0.0, %v2736
      %v2738 = vpop.f32.mrb[0].mxu0
      %v2739 = vpop.f32.mrb[0].mxu0
      %v2740 = vadd.f32 0.0, %v2739
      %v2741 = vpop.f32.mrb[0].mxu0
      %2742 = vmatprep.mubr.bf16.mxu0 0
      %2743 = vmatmul.mubr.bf16.gmra.mrb[0].mxu0 %v2654
      %v2744 = vpop.f32.mrb[0].mxu0
      %v2745 = vadd.f32 0.0, %v2744
      %v2746 = vpop.f32.mrb[0].mxu0
      %v2747 = vpop.f32.mrb[0].mxu0
      %v2748 = vadd.f32 0.0, %v2747
      %v2749 = vpop.f32.mrb[0].mxu0
      %2750 = vmatprep.mubr.bf16.mxu0 0
      %2751 = vmatmul.mubr.bf16.gmra.mrb[0].mxu0 %v2657
      %v2752 = vpop.f32.mrb[0].mxu0
      %v2753 = vadd.f32 0.0, %v2752
      %v2754 = vpop.f32.mrb[0].mxu0
      %v2755 = vpop.f32.mrb[0].mxu0
      %v2756 = vadd.f32 0.0, %v2755
      %v2757 = vpop.f32.mrb[0].mxu0
      %2758 = vdwg.mxu0
      %v2759 = vadd.f32 %v2505, %v2697
      %v2760 = vadd.f32 %v2506, %v2700
      %v2761 = vadd.f32 %v2507, %v2705
      %v2762 = vadd.f32 %v2508, %v2708
      %v2763 = vadd.f32 %v2509, %v2713
      %v2764 = vadd.f32 %v2510, %v2716
      %v2765 = vadd.f32 %v2511, %v2721
      %v2766 = vadd.f32 %v2512, %v2724
      %v2767 = vadd.f32 %v2513, %v2729
      %v2768 = vadd.f32 %v2514, %v2732
      %v2769 = vadd.f32 %v2515, %v2737
      %v2770 = vadd.f32 %v2516, %v2740
      %v2771 = vadd.f32 %v2517, %v2745
      %v2772 = vadd.f32 %v2518, %v2748
      %v2773 = vadd.f32 %v2519, %v2753
      %v2774 = vadd.f32 %v2520, %v2756
      %2775 = vst [vmem:[%s254] sm:$0xff] %v2759
      %2776 = vst [vmem:[%s254 + $0x8] sm:$0xff] %v2760
      %2777 = vst [vmem:[%s254 + $0x10] sm:$0xff] %v2761
      %2778 = vst [vmem:[%s254 + $0x18] sm:$0xff] %v2762
      %2779 = vst [vmem:[%s254 + $0x20] sm:$0xff] %v2763
      %2780 = vst [vmem:[%s254 + $0x28] sm:$0xff] %v2764
      %2781 = vst [vmem:[%s254 + $0x30] sm:$0xff] %v2765
      %2782 = vst [vmem:[%s254 + $0x38] sm:$0xff] %v2766
      %2783 = vst [vmem:[%s254 + $0x40] sm:$0xff] %v2767
      %2784 = vst [vmem:[%s254 + $0x48] sm:$0xff] %v2768
      %2785 = vst [vmem:[%s254 + $0x50] sm:$0xff] %v2769
      %2786 = vst [vmem:[%s254 + $0x58] sm:$0xff] %v2770
      %2787 = vst [vmem:[%s254 + $0x60] sm:$0xff] %v2771
      %2788 = vst [vmem:[%s254 + $0x68] sm:$0xff] %v2772
      %2789 = vst [vmem:[%s254 + $0x70] sm:$0xff] %v2773
      %2790 = vst [vmem:[%s254 + $0x78] sm:$0xff] %v2774
      %s2791 = smul.u32 8, %s20
      %p2792 = scmp.lt.s32.totalorder %s19, 1
      %s2793 = scalar_select %p2792, %s19, 1
      %p2794 = scmp.lt.s32.totalorder %s2791, 15
      %s2795 = scalar_select %p2794, %s2791, 15
      %p2796 = scmp.lt.s32.totalorder %s21, 0
      %s2797 = scalar_select %p2796, %s21, 0
      %s2798 = smul.addr %s2795, 2
      %s2799 = sadd.s32 %s2797, %s2798
      %s2800 = smul.addr %s2793, 32
      %s2801 = sadd.s32 %s2799, %s2800
      %s2802 = smul.addr %s2801, 8
      %s2803 = scalar_lea.vmem %s3, %s2802
      // Predicated region
      $region33: #{conv2d_pallas.1} parent=31 // pred_check
        %p2804 = pneg %p135
      $region34: #{conv2d_pallas.1} parent=31 // pred_check_branch
        %2806 = sbr.rel (%p2804) target = $region36
      $region35: #{conv2d_pallas.1} parent=31 // pred_region
        %s2807 = smul.u32 8, %s20
      $region36: #{conv2d_pallas.1} parent=31 // pred_fallthru
        _
    $region32: #{conv2d_pallas.1} parent=5 // pred_fallthru
      _
    %p2808 = scmp.le.s32.totalorder 2, %s9
    // Predicated region
    $region37: #{conv2d_pallas.1} parent=5 // pred_check
      %p2809 = pneg %p2808
    $region38: #{conv2d_pallas.1} parent=5 // pred_check_branch
      %2811 = sbr.rel (%p2809) target = $region40
    $region39: #{conv2d_pallas.1} parent=5 // pred_region
      %s2812 = ssub.s32 %s9, 2
      // Predicated region
      $region41: #{conv2d_pallas.1} parent=39 // pred_check
        %p2813 = pneg %p141
      $region42: #{conv2d_pallas.1} parent=39 // pred_check_branch
        %2815 = sbr.rel (%p2813) target = $region44
      $region43: #{conv2d_pallas.1} parent=39 // pred_region
        %s2816 = smul.u32 8, %s23
        %p2817 = scmp.lt.s32.totalorder %s22, 1
        %s2818 = scalar_select %p2817, %s22, 1
        %p2819 = scmp.lt.s32.totalorder %s2816, 15
        %s2820 = scalar_select %p2819, %s2816, 15
        %p2821 = scmp.lt.s32.totalorder %s24, 0
        %s2822 = scalar_select %p2821, %s24, 0
        %s2823 = smul.addr %s2820, 2
        %s2824 = sadd.s32 %s2822, %s2823
        %s2825 = smul.addr %s2818, 32
        %s2826 = sadd.s32 %s2824, %s2825
        %s2827 = smul.addr %s2826, 8
        %s2828 = scalar_lea.vmem %s3, %s2827
      $region44: #{conv2d_pallas.1} parent=39 // pred_fallthru
        _
    $region40: #{conv2d_pallas.1} parent=5 // pred_fallthru
      _
  $region6: #{conv2d_pallas.1} parent=0 // loop_footer
    %s13 = sadd.s32 1, %s9
  $region7: #{conv2d_pallas.1} parent=0 // loop_footer_branch
    %8 = sbr.rel target = $region3
  $region8: #{conv2d_pallas.1} parent=0 // loop_exit
    _

</llo_original>
